<compile_context>
chip_gen: v6e
topology: v6e:2x2x1
jax: 0.10.0
libtpu: 0.0.40
codegen_flags: <defaults>
</compile_context>

<pallas_src>
from functools import partial

import jax
import jax.numpy as jnp
from jax import lax
from jax.experimental import pallas as pl
from jax.experimental.pallas import tpu as pltpu

_LANE = 128        # lane width: pad all hidden/output feature dims to multiples of this
_SUBLANE = 16      # sublane padding for rows (16 -> also safe for packed bf16 tiles)


def _round_up(n, m):
    return ((n + m - 1) // m) * m


def _vmem_budget_and_limit():
    """Generation-aware VMEM sizing (v7x has 64 MiB physical, v5e/v6e have 128 MiB)."""
    cap = 64 * 1024 * 1024                        # conservative fallback (= v7x)
    try:
        cap = int(pltpu.get_tpu_info().vmem_capacity_bytes)
    except Exception:                             # noqa: BLE001 - keep conservative cap
        pass
    limit = min(cap * 3 // 4, 100 * 1024 * 1024)  # ~48 MiB on v7x, ~96 MiB on v5e/v6e
    budget = limit - 8 * 1024 * 1024              # headroom for compiler-internal scratch
    return budget, limit


_VMEM_BUDGET, _VMEM_LIMIT = _vmem_budget_and_limit()


# ------------------- RNN recurrence kernel (fused input projection + time chunk) -------------------
def _rnn_recur_kernel(x_ref, wih_ref, whh_ref, b_ref, out_ref, xw_ref, h_ref):
    # grid = (batch blocks ["parallel"], time chunks ["arbitrary"]); state carried in h_ref.
    @pl.when(pl.program_id(1) == 0)
    def _():
        h_ref[...] = jnp.zeros_like(h_ref)

    tc, bb, i_pad = x_ref.shape
    h_pad = whh_ref.shape[0]

    # Fused, hoisted input projection for the whole chunk: one bf16 MXU pass, outside the
    # serial loop, into VMEM scratch (no HBM round trip of xw).
    x2 = x_ref[...].reshape(tc * bb, i_pad)
    xw = jnp.dot(x2, wih_ref[...], preferred_element_type=jnp.float32) + b_ref[...]
    xw_ref[...] = xw.reshape(tc, bb, h_pad)

    whh = whh_ref[...]                                   # load W_hh once per chunk
    # TODO(synk): keep W_hh resident in the MXU across the unrolled loop via
    #             pltpu.matmul_push_rhs / matmul_acc_lhs / matmul_pop (kept jnp.dot
    #             here for portability across TPU generations).

    def step(t, h):
        pre = xw_ref[t] + jnp.dot(h, whh, preferred_element_type=jnp.float32)
        h_new = jnp.tanh(pre)
        out_ref[t] = h_new.astype(out_ref.dtype)
        return h_new

    unroll = True if tc <= 32 else 8
    h_ref[...] = lax.fori_loop(0, tc, step, h_ref[...], unroll=unroll)


def rnn_layer(x_tbi, w_ih_bf16, w_hh, b, *, max_time_chunk=128):
    """x_tbi: (T, B_pad, I_pad) bf16 -> (T, B_pad, H_pad) bf16, time-major."""
    T, B, I = x_tbi.shape
    H = w_hh.shape[0]

    # VMEM footprint (bytes): per unit of tc -> x block (bf16, x2 buffers) + out block
    # (bf16, x2) + xw scratch (f32); fixed -> weights (double-buffered), bias, h scratch.
    per_t = B * (2 * 2 * I + 2 * 2 * H + 4 * H)
    fixed = 2 * 2 * I * H + 2 * 4 * H * H + 2 * 4 * H + 4 * B * H
    tc = int(max(1, min(max_time_chunk, T, (_VMEM_BUDGET - fixed) // max(per_t, 1))))

    # Leading "parallel" batch axis: lets v7x's second TensorCore take half the batch.
    bb = B if B < 2 * _SUBLANE else _round_up(B // 2, _SUBLANE)
    if B % bb != 0:
        bb = B
    n_bb = B // bb

    return pl.pallas_call(
        _rnn_recur_kernel,
        out_shape=jax.ShapeDtypeStruct((T, B, H), jnp.bfloat16),
        grid_spec=pltpu.PrefetchScalarGridSpec(
            num_scalar_prefetch=0,
            grid=(n_bb, pl.cdiv(T, tc)),
            in_specs=[
                pl.BlockSpec((tc, bb, I), lambda bi, ti: (ti, bi, 0)),
                pl.BlockSpec((I, H), lambda bi, ti: (0, 0)),
                pl.BlockSpec((H, H), lambda bi, ti: (0, 0)),
                pl.BlockSpec((1, H), lambda bi, ti: (0, 0)),
            ],
            out_specs=pl.BlockSpec((tc, bb, H), lambda bi, ti: (ti, bi, 0)),
            scratch_shapes=[pltpu.VMEM((tc, bb, H), jnp.float32),   # xw (per chunk)
                            pltpu.VMEM((bb, H), jnp.float32)],      # carried hidden state
        ),
        compiler_params=pltpu.CompilerParams(
            dimension_semantics=("parallel", "arbitrary"),
            vmem_limit_bytes=_VMEM_LIMIT),
    )(x_tbi, w_ih_bf16, w_hh, b)


# ------------------- dense head kernel (row-tiled, fused mean/var matmul, lane-dense) -------------------
def _head_kernel(r_ref, wfc_ref, bfc_ref, wout_ref, bout_ref, mu_ref, var_ref):
    o_pad = mu_ref.shape[-1]
    r = r_ref[...].astype(jnp.bfloat16)
    y = jnp.maximum(
        jnp.dot(r, wfc_ref[...], preferred_element_type=jnp.float32) + bfc_ref[...],
        0.0)
    # Fused fc_mean / fc_vars: single (tile, Hd) x (Hd, 2*O_pad) MXU pass.
    z = jnp.dot(y.astype(jnp.bfloat16), wout_ref[...],
                preferred_element_type=jnp.float32) + bout_ref[...]
    mu = z[:, :o_pad]
    v = z[:, o_pad:]
    mu_ref[...] = mu
    var_ref[...] = jnp.maximum(v, 0.0) + jnp.log1p(jnp.exp(-jnp.abs(v)))  # stable softplus


def dense_head(r, head, *, max_tile=512):
    """r: (N, H_pad) -> (mu (N, O_pad) f32, softplus_out (N, O_pad) f32)."""
    N, H = r.shape
    Hd = head["w_fc"].shape[1]
    O2 = head["w_out"].shape[1]
    o_pad = O2 // 2

    per_row = 2 * r.dtype.itemsize * H + 2 * 2 * 4 * o_pad
    fixed = 2 * (2 * H * Hd + 4 * Hd + 2 * Hd * O2 + 4 * O2)
    budget_rows = ((_VMEM_BUDGET - fixed) // max(per_row, 1)) // _SUBLANE * _SUBLANE
    tile = int(max(_SUBLANE, min(max_tile, _round_up(N, _SUBLANE), budget_rows)))

    mu, sp = pl.pallas_call(
        _head_kernel,
        out_shape=(jax.ShapeDtypeStruct((N, o_pad), jnp.float32),
                   jax.ShapeDtypeStruct((N, o_pad), jnp.float32)),
        grid_spec=pltpu.PrefetchScalarGridSpec(
            num_scalar_prefetch=0,
            grid=(pl.cdiv(N, tile),),                 # partial last block tolerated
            in_specs=[
                pl.BlockSpec((tile, H), lambda i: (i, 0)),
                pl.BlockSpec((H, Hd), lambda i: (0, 0)),
                pl.BlockSpec((1, Hd), lambda i: (0, 0)),
                pl.BlockSpec((Hd, O2), lambda i: (0, 0)),
                pl.BlockSpec((1, O2), lambda i: (0, 0)),
            ],
            out_specs=(pl.BlockSpec((tile, o_pad), lambda i: (i, 0)),
                       pl.BlockSpec((tile, o_pad), lambda i: (i, 0))),
        ),
        compiler_params=pltpu.CompilerParams(
            dimension_semantics=("parallel",),
            vmem_limit_bytes=_VMEM_LIMIT),
    )(r, head["w_fc"], head["b_fc"], head["w_out"], head["b_out"])
    return mu, sp


# ------------------- parameter init (logical shapes) + lane-dense packing -------------------
def _uniform(key, shape):
    return jax.random.uniform(key, shape, jnp.float32, -0.1, 0.1)


def init_rnn_model_params(key, input_size, output_size, n_hidden, n_layers,
                          n_hidden_dense):
    params = {"layers": []}
    k = key
    for l in range(n_layers):
        in_dim = input_size if l == 0 else n_hidden
        k, k1, k2, k3 = jax.random.split(k, 4)
        params["layers"].append({
            "w_ih": _uniform(k1, (in_dim, n_hidden)),
            "w_hh": _uniform(k2, (n_hidden, n_hidden)),
            "b":    _uniform(k3, (1, n_hidden)),          # b_ih + b_hh combined
        })
    k, k1, k2, k3, k4, k5, k6 = jax.random.split(k, 7)
    params["head"] = {
        "w_fc":  _uniform(k1, (n_hidden, n_hidden_dense)),
        "b_fc":  _uniform(k2, (1, n_hidden_dense)),
        "w_mu":  _uniform(k3, (n_hidden_dense, output_size)),
        "b_mu":  _uniform(k4, (1, output_size)),
        "w_var": _uniform(k5, (n_hidden_dense, output_size)),
        "b_var": _uniform(k6, (1, output_size)),
    }
    return params


def pack_params(params, input_size, output_size, n_hidden, n_hidden_dense):
    """Pad weights to lane-dense (x128) device layouts, cast matmul weights to bf16,
    and fuse fc_mean / fc_vars into one output matmul weight."""
    i_pad0 = _round_up(input_size, _LANE)
    h_pad = _round_up(n_hidden, _LANE)
    hd_pad = _round_up(n_hidden_dense, _LANE)
    o_pad = _round_up(output_size, _LANE)

    layers = []
    for l, lp in enumerate(params["layers"]):
        in_dim = input_size if l == 0 else n_hidden
        in_pad = i_pad0 if l == 0 else h_pad
        w_ih = jnp.zeros((in_pad, h_pad), jnp.float32).at[:in_dim, :n_hidden].set(lp["w_ih"])
        w_hh = jnp.zeros((h_pad, h_pad), jnp.float32).at[:n_hidden, :n_hidden].set(lp["w_hh"])
        b = jnp.zeros((1, h_pad), jnp.float32).at[:, :n_hidden].set(lp["b"])
        layers.append({"w_ih": w_ih.astype(jnp.bfloat16), "w_hh": w_hh, "b": b})

    hp = params["head"]
    w_fc = jnp.zeros((h_pad, hd_pad), jnp.float32).at[:n_hidden, :n_hidden_dense].set(hp["w_fc"])
    b_fc = jnp.zeros((1, hd_pad), jnp.float32).at[:, :n_hidden_dense].set(hp["b_fc"])
    w_mu = jnp.zeros((hd_pad, o_pad), jnp.float32).at[:n_hidden_dense, :output_size].set(hp["w_mu"])
    b_mu = jnp.zeros((1, o_pad), jnp.float32).at[:, :output_size].set(hp["b_mu"])
    w_var = jnp.zeros((hd_pad, o_pad), jnp.float32).at[:n_hidden_dense, :output_size].set(hp["w_var"])
    b_var = jnp.zeros((1, o_pad), jnp.float32).at[:, :output_size].set(hp["b_var"])
    head = {
        "w_fc": w_fc.astype(jnp.bfloat16),
        "b_fc": b_fc,
        "w_out": jnp.concatenate([w_mu, w_var], axis=1).astype(jnp.bfloat16),
        "b_out": jnp.concatenate([b_mu, b_var], axis=1),
    }
    return {"layers": layers, "head": head}


# ------------------- forward pass -------------------
@partial(jax.jit, static_argnums=(3, 4, 5))
def rnn_model_forward(packed, x, h0_key, n_layers, n_hidden, output_size):
    """x: (B, T, input_size) batch_first -> (mu (B, T, O), vars (B, T, O))."""
    B, T, I = x.shape
    i_pad0 = packed["layers"][0]["w_ih"].shape[0]
    h_pad = packed["layers"][0]["w_hh"].shape[0]
    o_pad = packed["head"]["w_out"].shape[1] // 2
    b_pad = _round_up(B, _SUBLANE)

    # Time-major, zero-padded to sublane/lane-dense sizes, bf16 matmul operand.
    h = jnp.zeros((T, b_pad, i_pad0), jnp.bfloat16)
    h = h.at[:, :B, :I].set(jnp.transpose(x, (1, 0, 2)).astype(jnp.bfloat16))

    for lp in packed["layers"]:
        h = rnn_layer(h, lp["w_ih"], lp["w_hh"], lp["b"])        # (T, b_pad, h_pad) bf16

    # Dense head directly on the time-major slab (no concat / H-wide transpose / pad copy);
    # the batch-major transpose happens on the small O-wide outputs.
    mu_t, var_t = dense_head(h.reshape(T * b_pad, h_pad), packed["head"])
    mu_2T = jnp.transpose(mu_t.reshape(T, b_pad, o_pad)[:, :B, :output_size], (1, 0, 2))
    var_2T = jnp.transpose(var_t.reshape(T, b_pad, o_pad)[:, :B, :output_size], (1, 0, 2))

    # torch forward calls init_h0 twice (fresh randn each time) -> two independent draws.
    k1, k2 = jax.random.split(h0_key)
    h0_a = jax.random.normal(k1, (n_layers, B, n_hidden), jnp.float32)[-1]
    h0_b = jax.random.normal(k2, (n_layers, B, n_hidden), jnp.float32)[-1]
    r0 = jnp.zeros((_round_up(2 * B, _SUBLANE), h_pad), jnp.float32)
    r0 = r0.at[:B, :n_hidden].set(h0_a).at[B:2 * B, :n_hidden].set(h0_b)
    mu0, var0 = dense_head(r0, packed["head"])                   # tiny second head call
    mu_1 = mu0[:B, :output_size].reshape(B, 1, output_size)      # from h0_a rows
    var_1 = var0[B:2 * B, :output_size].reshape(B, 1, output_size)  # from h0_b rows

    mu = jnp.concatenate([mu_1, mu_2T[:, :-1, :]], axis=1)
    vars_ = jnp.concatenate([var_1, var_2T[:, :-1, :]], axis=1)
    return mu, vars_


# ------------------- demo -------------------
if __name__ == "__main__":
    B, T = 2, 8
    input_size, output_size = 4, 4
    n_hidden, n_layers, n_hidden_dense = 32, 1, 32

    root = jax.random.PRNGKey(0)
    k_params, k_x, k_h0 = jax.random.split(root, 3)

    params = init_rnn_model_params(k_params, input_size, output_size, n_hidden,
                                   n_layers, n_hidden_dense)
    packed = pack_params(params, input_size, output_size, n_hidden, n_hidden_dense)
    x = jax.random.normal(k_x, (B, T, input_size), jnp.float32)

    mu, vars_ = rnn_model_forward(packed, x, k_h0, n_layers, n_hidden, output_size)
    jax.block_until_ready((mu, vars_))

    assert mu.shape == (B, T, output_size)
    assert vars_.shape == (B, T, output_size)
    assert bool(jnp.all(jnp.isfinite(mu))) and bool(jnp.all(jnp.isfinite(vars_)))
    assert bool(jnp.all(vars_ > 0))

    print("KERNEL_OK")
</pallas_src>

<mosaic_0001>
module attributes {stable_mosaic.version = 11 : i64} {
  func.func @_rnn_recur_kernel(%arg0: i32, %arg1: i32, %arg2: memref<8x16x128xbf16, #tpu.memory_space<vmem>>, %arg3: memref<128x128xbf16, #tpu.memory_space<vmem>>, %arg4: memref<128x128xf32, #tpu.memory_space<vmem>>, %arg5: memref<1x128xf32, #tpu.memory_space<vmem>>, %arg6: memref<8x16x128xbf16, #tpu.memory_space<vmem>>, %arg7: memref<8x16x128xf32, #tpu.memory_space<vmem>>, %arg8: memref<16x128xf32, #tpu.memory_space<vmem>>) attributes {dimension_semantics = [#tpu.dimension_semantics<parallel>, #tpu.dimension_semantics<arbitrary>], iteration_bounds = array<i64: 1, 1>, scalar_prefetch = 0 : i64, scratch_operands = 2 : i64, tpu.core_type = #tpu.core_type<tc>, window_params = [{transform_indices = @transform_0, window_bounds = array<i64: 8, 16, 128>}, {pipeline_mode = #tpu.pipeline_mode<synchronous>, transform_indices = @transform_1, window_bounds = array<i64: 128, 128>}, {pipeline_mode = #tpu.pipeline_mode<synchronous>, transform_indices = @transform_2, window_bounds = array<i64: 128, 128>}, {pipeline_mode = #tpu.pipeline_mode<synchronous>, transform_indices = @transform_3, window_bounds = array<i64: 1, 128>}, {transform_indices = @transform_4, window_bounds = array<i64: 8, 16, 128>}]} {
    %c0_i32 = arith.constant 0 : i32
    %0 = arith.cmpi eq, %arg1, %c0_i32 : i32
    %1 = arith.extui %0 : i1 to i32
    %c0_i32_0 = arith.constant 0 : i32
    %2 = arith.cmpi ne, %1, %c0_i32_0 : i32
    scf.if %2 {
      %cst_57 = arith.constant 0.000000e+00 : f32
      %103 = vector.broadcast %cst_57 : f32 to vector<16x128xf32>
      %c0_58 = arith.constant 0 : index
      %c0_59 = arith.constant 0 : index
      %104 = vector.load %arg8[%c0_58, %c0_59] : memref<16x128xf32, #tpu.memory_space<vmem>>, vector<16x128xf32>
      tpu.vector_store %arg8[%c0_58, %c0_59], %103 {strides = array<i32>} : memref<16x128xf32, #tpu.memory_space<vmem>>, vector<16x128xf32>,
    } else {
    }
    %c0 = arith.constant 0 : index
    %c0_1 = arith.constant 0 : index
    %c0_2 = arith.constant 0 : index
    %3 = vector.load %arg2[%c0, %c0_1, %c0_2] : memref<8x16x128xbf16, #tpu.memory_space<vmem>>, vector<8x16x128xbf16>
    %4 = vector.shape_cast %3 : vector<8x16x128xbf16> to vector<128x128xbf16>
    %c0_3 = arith.constant 0 : index
    %c0_4 = arith.constant 0 : index
    %5 = vector.load %arg3[%c0_3, %c0_4] : memref<128x128xbf16, #tpu.memory_space<vmem>>, vector<128x128xbf16>
    %cst = arith.constant dense<0.000000e+00> : vector<128x128xf32>
    %6 = tpu.matmul %4, %5, %cst {dimension_numbers = #tpu.dot_dimension_numbers<[1], [0], [0], [1], [0, 0, 1, 1], [], []>} : vector<128x128xbf16>, vector<128x128xbf16>, vector<128x128xf32> -> vector<128x128xf32>
    %c0_5 = arith.constant 0 : index
    %c0_6 = arith.constant 0 : index
    %7 = vector.load %arg5[%c0_5, %c0_6] : memref<1x128xf32, #tpu.memory_space<vmem>>, vector<1x128xf32>
    %8 = vector.broadcast %7 : vector<1x128xf32> to vector<128x128xf32>
    %9 = arith.addf %6, %8 : vector<128x128xf32>
    %10 = vector.shape_cast %9 : vector<128x128xf32> to vector<8x16x128xf32>
    %c0_7 = arith.constant 0 : index
    %c0_8 = arith.constant 0 : index
    %c0_9 = arith.constant 0 : index
    %11 = vector.load %arg7[%c0_7, %c0_8, %c0_9] : memref<8x16x128xf32, #tpu.memory_space<vmem>>, vector<8x16x128xf32>
    tpu.vector_store %arg7[%c0_7, %c0_8, %c0_9], %10 {strides = array<i32>} : memref<8x16x128xf32, #tpu.memory_space<vmem>>, vector<8x16x128xf32>,
    %c0_10 = arith.constant 0 : index
    %c0_11 = arith.constant 0 : index
    %12 = vector.load %arg4[%c0_10, %c0_11] : memref<128x128xf32, #tpu.memory_space<vmem>>, vector<128x128xf32>
    %c0_12 = arith.constant 0 : index
    %c0_13 = arith.constant 0 : index
    %13 = vector.load %arg8[%c0_12, %c0_13] : memref<16x128xf32, #tpu.memory_space<vmem>>, vector<16x128xf32>
    %c0_i32_14 = arith.constant 0 : i32
    %14 = arith.index_cast %c0_i32_14 : i32 to index
    %c0_15 = arith.constant 0 : index
    %c0_16 = arith.constant 0 : index
    %15 = vector.load %arg7[%14, %c0_15, %c0_16] : memref<8x16x128xf32, #tpu.memory_space<vmem>>, vector<1x16x128xf32>
    %16 = vector.shape_cast %15 : vector<1x16x128xf32> to vector<16x128xf32>
    %cst_17 = arith.constant dense<0.000000e+00> : vector<16x128xf32>
    %17 = tpu.matmul %13, %12, %cst_17 {dimension_numbers = #tpu.dot_dimension_numbers<[1], [0], [0], [1], [0, 0, 1, 1], [], []>} : vector<16x128xf32>, vector<128x128xf32>, vector<16x128xf32> -> vector<16x128xf32>
    %18 = arith.addf %16, %17 : vector<16x128xf32>
    %19 = math.tanh %18 : vector<16x128xf32>
    %20 = arith.truncf %19 : vector<16x128xf32> to vector<16x128xbf16>
    %21 = arith.index_cast %c0_i32_14 : i32 to index
    %c0_18 = arith.constant 0 : index
    %c0_19 = arith.constant 0 : index
    %22 = vector.load %arg6[%21, %c0_18, %c0_19] : memref<8x16x128xbf16, #tpu.memory_space<vmem>>, vector<1x16x128xbf16>
    %23 = vector.shape_cast %22 : vector<1x16x128xbf16> to vector<16x128xbf16>
    %24 = vector.shape_cast %20 : vector<16x128xbf16> to vector<1x16x128xbf16>
    tpu.vector_store %arg6[%21, %c0_18, %c0_19], %24 {strides = array<i32>} : memref<8x16x128xbf16, #tpu.memory_space<vmem>>, vector<1x16x128xbf16>,
    %c1_i32 = arith.constant 1 : i32
    %25 = arith.index_cast %c1_i32 : i32 to index
    %c0_20 = arith.constant 0 : index
    %c0_21 = arith.constant 0 : index
    %26 = vector.load %arg7[%25, %c0_20, %c0_21] : memref<8x16x128xf32, #tpu.memory_space<vmem>>, vector<1x16x128xf32>
    %27 = vector.shape_cast %26 : vector<1x16x128xf32> to vector<16x128xf32>
    %cst_22 = arith.constant dense<0.000000e+00> : vector<16x128xf32>
    %28 = tpu.matmul %19, %12, %cst_22 {dimension_numbers = #tpu.dot_dimension_numbers<[1], [0], [0], [1], [0, 0, 1, 1], [], []>} : vector<16x128xf32>, vector<128x128xf32>, vector<16x128xf32> -> vector<16x128xf32>
    %29 = arith.addf %27, %28 : vector<16x128xf32>
    %30 = math.tanh %29 : vector<16x128xf32>
    %31 = arith.truncf %30 : vector<16x128xf32> to vector<16x128xbf16>
    %32 = arith.index_cast %c1_i32 : i32 to index
    %c0_23 = arith.constant 0 : index
    %c0_24 = arith.constant 0 : index
    %33 = vector.load %arg6[%32, %c0_23, %c0_24] : memref<8x16x128xbf16, #tpu.memory_space<vmem>>, vector<1x16x128xbf16>
    %34 = vector.shape_cast %33 : vector<1x16x128xbf16> to vector<16x128xbf16>
    %35 = vector.shape_cast %31 : vector<16x128xbf16> to vector<1x16x128xbf16>
    tpu.vector_store %arg6[%32, %c0_23, %c0_24], %35 {strides = array<i32>} : memref<8x16x128xbf16, #tpu.memory_space<vmem>>, vector<1x16x128xbf16>,
    %c2_i32 = arith.constant 2 : i32
    %36 = arith.index_cast %c2_i32 : i32 to index
    %c0_25 = arith.constant 0 : index
    %c0_26 = arith.constant 0 : index
    %37 = vector.load %arg7[%36, %c0_25, %c0_26] : memref<8x16x128xf32, #tpu.memory_space<vmem>>, vector<1x16x128xf32>
    %38 = vector.shape_cast %37 : vector<1x16x128xf32> to vector<16x128xf32>
    %cst_27 = arith.constant dense<0.000000e+00> : vector<16x128xf32>
    %39 = tpu.matmul %30, %12, %cst_27 {dimension_numbers = #tpu.dot_dimension_numbers<[1], [0], [0], [1], [0, 0, 1, 1], [], []>} : vector<16x128xf32>, vector<128x128xf32>, vector<16x128xf32> -> vector<16x128xf32>
    %40 = arith.addf %38, %39 : vector<16x128xf32>
    %41 = math.tanh %40 : vector<16x128xf32>
    %42 = arith.truncf %41 : vector<16x128xf32> to vector<16x128xbf16>
    %43 = arith.index_cast %c2_i32 : i32 to index
    %c0_28 = arith.constant 0 : index
    %c0_29 = arith.constant 0 : index
    %44 = vector.load %arg6[%43, %c0_28, %c0_29] : memref<8x16x128xbf16, #tpu.memory_space<vmem>>, vector<1x16x128xbf16>
    %45 = vector.shape_cast %44 : vector<1x16x128xbf16> to vector<16x128xbf16>
    %46 = vector.shape_cast %42 : vector<16x128xbf16> to vector<1x16x128xbf16>
    tpu.vector_store %arg6[%43, %c0_28, %c0_29], %46 {strides = array<i32>} : memref<8x16x128xbf16, #tpu.memory_space<vmem>>, vector<1x16x128xbf16>,
    %c3_i32 = arith.constant 3 : i32
    %47 = arith.index_cast %c3_i32 : i32 to index
    %c0_30 = arith.constant 0 : index
    %c0_31 = arith.constant 0 : index
    %48 = vector.load %arg7[%47, %c0_30, %c0_31] : memref<8x16x128xf32, #tpu.memory_space<vmem>>, vector<1x16x128xf32>
    %49 = vector.shape_cast %48 : vector<1x16x128xf32> to vector<16x128xf32>
    %cst_32 = arith.constant dense<0.000000e+00> : vector<16x128xf32>
    %50 = tpu.matmul %41, %12, %cst_32 {dimension_numbers = #tpu.dot_dimension_numbers<[1], [0], [0], [1], [0, 0, 1, 1], [], []>} : vector<16x128xf32>, vector<128x128xf32>, vector<16x128xf32> -> vector<16x128xf32>
    %51 = arith.addf %49, %50 : vector<16x128xf32>
    %52 = math.tanh %51 : vector<16x128xf32>
    %53 = arith.truncf %52 : vector<16x128xf32> to vector<16x128xbf16>
    %54 = arith.index_cast %c3_i32 : i32 to index
    %c0_33 = arith.constant 0 : index
    %c0_34 = arith.constant 0 : index
    %55 = vector.load %arg6[%54, %c0_33, %c0_34] : memref<8x16x128xbf16, #tpu.memory_space<vmem>>, vector<1x16x128xbf16>
    %56 = vector.shape_cast %55 : vector<1x16x128xbf16> to vector<16x128xbf16>
    %57 = vector.shape_cast %53 : vector<16x128xbf16> to vector<1x16x128xbf16>
    tpu.vector_store %arg6[%54, %c0_33, %c0_34], %57 {strides = array<i32>} : memref<8x16x128xbf16, #tpu.memory_space<vmem>>, vector<1x16x128xbf16>,
    %c4_i32 = arith.constant 4 : i32
    %58 = arith.index_cast %c4_i32 : i32 to index
    %c0_35 = arith.constant 0 : index
    %c0_36 = arith.constant 0 : index
    %59 = vector.load %arg7[%58, %c0_35, %c0_36] : memref<8x16x128xf32, #tpu.memory_space<vmem>>, vector<1x16x128xf32>
    %60 = vector.shape_cast %59 : vector<1x16x128xf32> to vector<16x128xf32>
    %cst_37 = arith.constant dense<0.000000e+00> : vector<16x128xf32>
    %61 = tpu.matmul %52, %12, %cst_37 {dimension_numbers = #tpu.dot_dimension_numbers<[1], [0], [0], [1], [0, 0, 1, 1], [], []>} : vector<16x128xf32>, vector<128x128xf32>, vector<16x128xf32> -> vector<16x128xf32>
    %62 = arith.addf %60, %61 : vector<16x128xf32>
    %63 = math.tanh %62 : vector<16x128xf32>
    %64 = arith.truncf %63 : vector<16x128xf32> to vector<16x128xbf16>
    %65 = arith.index_cast %c4_i32 : i32 to index
    %c0_38 = arith.constant 0 : index
    %c0_39 = arith.constant 0 : index
    %66 = vector.load %arg6[%65, %c0_38, %c0_39] : memref<8x16x128xbf16, #tpu.memory_space<vmem>>, vector<1x16x128xbf16>
    %67 = vector.shape_cast %66 : vector<1x16x128xbf16> to vector<16x128xbf16>
    %68 = vector.shape_cast %64 : vector<16x128xbf16> to vector<1x16x128xbf16>
    tpu.vector_store %arg6[%65, %c0_38, %c0_39], %68 {strides = array<i32>} : memref<8x16x128xbf16, #tpu.memory_space<vmem>>, vector<1x16x128xbf16>,
    %c5_i32 = arith.constant 5 : i32
    %69 = arith.index_cast %c5_i32 : i32 to index
    %c0_40 = arith.constant 0 : index
    %c0_41 = arith.constant 0 : index
    %70 = vector.load %arg7[%69, %c0_40, %c0_41] : memref<8x16x128xf32, #tpu.memory_space<vmem>>, vector<1x16x128xf32>
    %71 = vector.shape_cast %70 : vector<1x16x128xf32> to vector<16x128xf32>
    %cst_42 = arith.constant dense<0.000000e+00> : vector<16x128xf32>
    %72 = tpu.matmul %63, %12, %cst_42 {dimension_numbers = #tpu.dot_dimension_numbers<[1], [0], [0], [1], [0, 0, 1, 1], [], []>} : vector<16x128xf32>, vector<128x128xf32>, vector<16x128xf32> -> vector<16x128xf32>
    %73 = arith.addf %71, %72 : vector<16x128xf32>
    %74 = math.tanh %73 : vector<16x128xf32>
    %75 = arith.truncf %74 : vector<16x128xf32> to vector<16x128xbf16>
    %76 = arith.index_cast %c5_i32 : i32 to index
    %c0_43 = arith.constant 0 : index
    %c0_44 = arith.constant 0 : index
    %77 = vector.load %arg6[%76, %c0_43, %c0_44] : memref<8x16x128xbf16, #tpu.memory_space<vmem>>, vector<1x16x128xbf16>
    %78 = vector.shape_cast %77 : vector<1x16x128xbf16> to vector<16x128xbf16>
    %79 = vector.shape_cast %75 : vector<16x128xbf16> to vector<1x16x128xbf16>
    tpu.vector_store %arg6[%76, %c0_43, %c0_44], %79 {strides = array<i32>} : memref<8x16x128xbf16, #tpu.memory_space<vmem>>, vector<1x16x128xbf16>,
    %c6_i32 = arith.constant 6 : i32
    %80 = arith.index_cast %c6_i32 : i32 to index
    %c0_45 = arith.constant 0 : index
    %c0_46 = arith.constant 0 : index
    %81 = vector.load %arg7[%80, %c0_45, %c0_46] : memref<8x16x128xf32, #tpu.memory_space<vmem>>, vector<1x16x128xf32>
    %82 = vector.shape_cast %81 : vector<1x16x128xf32> to vector<16x128xf32>
    %cst_47 = arith.constant dense<0.000000e+00> : vector<16x128xf32>
    %83 = tpu.matmul %74, %12, %cst_47 {dimension_numbers = #tpu.dot_dimension_numbers<[1], [0], [0], [1], [0, 0, 1, 1], [], []>} : vector<16x128xf32>, vector<128x128xf32>, vector<16x128xf32> -> vector<16x128xf32>
    %84 = arith.addf %82, %83 : vector<16x128xf32>
    %85 = math.tanh %84 : vector<16x128xf32>
    %86 = arith.truncf %85 : vector<16x128xf32> to vector<16x128xbf16>
    %87 = arith.index_cast %c6_i32 : i32 to index
    %c0_48 = arith.constant 0 : index
    %c0_49 = arith.constant 0 : index
    %88 = vector.load %arg6[%87, %c0_48, %c0_49] : memref<8x16x128xbf16, #tpu.memory_space<vmem>>, vector<1x16x128xbf16>
    %89 = vector.shape_cast %88 : vector<1x16x128xbf16> to vector<16x128xbf16>
    %90 = vector.shape_cast %86 : vector<16x128xbf16> to vector<1x16x128xbf16>
    tpu.vector_store %arg6[%87, %c0_48, %c0_49], %90 {strides = array<i32>} : memref<8x16x128xbf16, #tpu.memory_space<vmem>>, vector<1x16x128xbf16>,
    %c7_i32 = arith.constant 7 : i32
    %91 = arith.index_cast %c7_i32 : i32 to index
    %c0_50 = arith.constant 0 : index
    %c0_51 = arith.constant 0 : index
    %92 = vector.load %arg7[%91, %c0_50, %c0_51] : memref<8x16x128xf32, #tpu.memory_space<vmem>>, vector<1x16x128xf32>
    %93 = vector.shape_cast %92 : vector<1x16x128xf32> to vector<16x128xf32>
    %cst_52 = arith.constant dense<0.000000e+00> : vector<16x128xf32>
    %94 = tpu.matmul %85, %12, %cst_52 {dimension_numbers = #tpu.dot_dimension_numbers<[1], [0], [0], [1], [0, 0, 1, 1], [], []>} : vector<16x128xf32>, vector<128x128xf32>, vector<16x128xf32> -> vector<16x128xf32>
    %95 = arith.addf %93, %94 : vector<16x128xf32>
    %96 = math.tanh %95 : vector<16x128xf32>
    %97 = arith.truncf %96 : vector<16x128xf32> to vector<16x128xbf16>
    %98 = arith.index_cast %c7_i32 : i32 to index
    %c0_53 = arith.constant 0 : index
    %c0_54 = arith.constant 0 : index
    %99 = vector.load %arg6[%98, %c0_53, %c0_54] : memref<8x16x128xbf16, #tpu.memory_space<vmem>>, vector<1x16x128xbf16>
    %100 = vector.shape_cast %99 : vector<1x16x128xbf16> to vector<16x128xbf16>
    %101 = vector.shape_cast %97 : vector<16x128xbf16> to vector<1x16x128xbf16>
    tpu.vector_store %arg6[%98, %c0_53, %c0_54], %101 {strides = array<i32>} : memref<8x16x128xbf16, #tpu.memory_space<vmem>>, vector<1x16x128xbf16>,
    %c8_i32 = arith.constant 8 : i32
    %c0_55 = arith.constant 0 : index
    %c0_56 = arith.constant 0 : index
    %102 = vector.load %arg8[%c0_55, %c0_56] : memref<16x128xf32, #tpu.memory_space<vmem>>, vector<16x128xf32>
    tpu.vector_store %arg8[%c0_55, %c0_56], %96 {strides = array<i32>} : memref<16x128xf32, #tpu.memory_space<vmem>>, vector<16x128xf32>,
    return
  }
  func.func @transform_0(%arg0: i32, %arg1: i32) -> (i32, i32, i32) {
    %c0_i32 = arith.constant 0 : i32
    %c0_i32_0 = arith.constant 0 : i32
    return %arg1, %arg0, %c0_i32 : i32, i32, i32
  }
  func.func @transform_1(%arg0: i32, %arg1: i32) -> (i32, i32) {
    %c0_i32 = arith.constant 0 : i32
    %c0_i32_0 = arith.constant 0 : i32
    %c0_i32_1 = arith.constant 0 : i32
    return %c0_i32, %c0_i32_0 : i32, i32
  }
  func.func @transform_2(%arg0: i32, %arg1: i32) -> (i32, i32) {
    %c0_i32 = arith.constant 0 : i32
    %c0_i32_0 = arith.constant 0 : i32
    %c0_i32_1 = arith.constant 0 : i32
    return %c0_i32, %c0_i32_0 : i32, i32
  }
  func.func @transform_3(%arg0: i32, %arg1: i32) -> (i32, i32) {
    %c0_i32 = arith.constant 0 : i32
    %c0_i32_0 = arith.constant 0 : i32
    %c0_i32_1 = arith.constant 0 : i32
    return %c0_i32, %c0_i32_0 : i32, i32
  }
  func.func @transform_4(%arg0: i32, %arg1: i32) -> (i32, i32, i32) {
    %c0_i32 = arith.constant 0 : i32
    %c0_i32_0 = arith.constant 0 : i32
    return %arg1, %arg0, %c0_i32 : i32, i32, i32
  }
}

module attributes {stable_mosaic.version = 11 : i64} {
  func.func @_head_kernel(%arg0: i32, %arg1: memref<128x128xbf16, #tpu.memory_space<vmem>>, %arg2: memref<128x128xbf16, #tpu.memory_space<vmem>>, %arg3: memref<1x128xf32, #tpu.memory_space<vmem>>, %arg4: memref<128x256xbf16, #tpu.memory_space<vmem>>, %arg5: memref<1x256xf32, #tpu.memory_space<vmem>>, %arg6: memref<128x128xf32, #tpu.memory_space<vmem>>, %arg7: memref<128x128xf32, #tpu.memory_space<vmem>>) attributes {dimension_semantics = [#tpu.dimension_semantics<parallel>], iteration_bounds = array<i64: 1>, scalar_prefetch = 0 : i64, scratch_operands = 0 : i64, tpu.core_type = #tpu.core_type<tc>, window_params = [{transform_indices = @transform_0, window_bounds = array<i64: 128, 128>}, {pipeline_mode = #tpu.pipeline_mode<synchronous>, transform_indices = @transform_1, window_bounds = array<i64: 128, 128>}, {pipeline_mode = #tpu.pipeline_mode<synchronous>, transform_indices = @transform_2, window_bounds = array<i64: 1, 128>}, {pipeline_mode = #tpu.pipeline_mode<synchronous>, transform_indices = @transform_3, window_bounds = array<i64: 128, 256>}, {pipeline_mode = #tpu.pipeline_mode<synchronous>, transform_indices = @transform_4, window_bounds = array<i64: 1, 256>}, {transform_indices = @transform_5, window_bounds = array<i64: 128, 128>}, {transform_indices = @transform_6, window_bounds = array<i64: 128, 128>}]} {
    %c0 = arith.constant 0 : index
    %c0_0 = arith.constant 0 : index
    %0 = vector.load %arg1[%c0, %c0_0] : memref<128x128xbf16, #tpu.memory_space<vmem>>, vector<128x128xbf16>
    %c0_1 = arith.constant 0 : index
    %c0_2 = arith.constant 0 : index
    %1 = vector.load %arg2[%c0_1, %c0_2] : memref<128x128xbf16, #tpu.memory_space<vmem>>, vector<128x128xbf16>
    %cst = arith.constant dense<0.000000e+00> : vector<128x128xf32>
    %2 = tpu.matmul %0, %1, %cst {dimension_numbers = #tpu.dot_dimension_numbers<[1], [0], [0], [1], [0, 0, 1, 1], [], []>} : vector<128x128xbf16>, vector<128x128xbf16>, vector<128x128xf32> -> vector<128x128xf32>
    %c0_3 = arith.constant 0 : index
    %c0_4 = arith.constant 0 : index
    %3 = vector.load %arg3[%c0_3, %c0_4] : memref<1x128xf32, #tpu.memory_space<vmem>>, vector<1x128xf32>
    %4 = vector.broadcast %3 : vector<1x128xf32> to vector<128x128xf32>
    %5 = arith.addf %2, %4 : vector<128x128xf32>
    %cst_5 = arith.constant 0.000000e+00 : f32
    %6 = vector.broadcast %cst_5 : f32 to vector<128x128xf32>
    %7 = arith.maximumf %5, %6 : vector<128x128xf32>
    %8 = arith.truncf %7 : vector<128x128xf32> to vector<128x128xbf16>
    %c0_6 = arith.constant 0 : index
    %c0_7 = arith.constant 0 : index
    %9 = vector.load %arg4[%c0_6, %c0_7] : memref<128x256xbf16, #tpu.memory_space<vmem>>, vector<128x256xbf16>
    %cst_8 = arith.constant dense<0.000000e+00> : vector<128x256xf32>
    %10 = tpu.matmul %8, %9, %cst_8 {dimension_numbers = #tpu.dot_dimension_numbers<[1], [0], [0], [1], [0, 0, 1, 1], [], []>} : vector<128x128xbf16>, vector<128x256xbf16>, vector<128x256xf32> -> vector<128x256xf32>
    %c0_9 = arith.constant 0 : index
    %c0_10 = arith.constant 0 : index
    %11 = vector.load %arg5[%c0_9, %c0_10] : memref<1x256xf32, #tpu.memory_space<vmem>>, vector<1x256xf32>
    %12 = vector.broadcast %11 : vector<1x256xf32> to vector<128x256xf32>
    %13 = arith.addf %10, %12 : vector<128x256xf32>
    %14 = vector.extract_strided_slice %13 {offsets = [0, 0], sizes = [128, 128], strides = [1, 1]} : vector<128x256xf32> to vector<128x128xf32>
    %15 = vector.extract_strided_slice %13 {offsets = [0, 128], sizes = [128, 128], strides = [1, 1]} : vector<128x256xf32> to vector<128x128xf32>
    %c0_11 = arith.constant 0 : index
    %c0_12 = arith.constant 0 : index
    %16 = vector.load %arg6[%c0_11, %c0_12] : memref<128x128xf32, #tpu.memory_space<vmem>>, vector<128x128xf32>
    tpu.vector_store %arg6[%c0_11, %c0_12], %14 {strides = array<i32>} : memref<128x128xf32, #tpu.memory_space<vmem>>, vector<128x128xf32>,
    %cst_13 = arith.constant 0.000000e+00 : f32
    %17 = vector.broadcast %cst_13 : f32 to vector<128x128xf32>
    %18 = arith.maximumf %15, %17 : vector<128x128xf32>
    %19 = math.absf %15 : vector<128x128xf32>
    %cst_14 = arith.constant 0.000000e+00 : f32
    %20 = vector.broadcast %cst_14 : f32 to vector<128x128xf32>
    %21 = arith.subf %20, %19 : vector<128x128xf32>
    %22 = math.exp %21 : vector<128x128xf32>
    %23 = math.log1p %22 : vector<128x128xf32>
    %24 = arith.addf %18, %23 : vector<128x128xf32>
    %c0_15 = arith.constant 0 : index
    %c0_16 = arith.constant 0 : index
    %25 = vector.load %arg7[%c0_15, %c0_16] : memref<128x128xf32, #tpu.memory_space<vmem>>, vector<128x128xf32>
    tpu.vector_store %arg7[%c0_15, %c0_16], %24 {strides = array<i32>} : memref<128x128xf32, #tpu.memory_space<vmem>>, vector<128x128xf32>,
    return
  }
  func.func @transform_0(%arg0: i32) -> (i32, i32) {
    %c0_i32 = arith.constant 0 : i32
    %c0_i32_0 = arith.constant 0 : i32
    return %arg0, %c0_i32 : i32, i32
  }
  func.func @transform_1(%arg0: i32) -> (i32, i32) {
    %c0_i32 = arith.constant 0 : i32
    %c0_i32_0 = arith.constant 0 : i32
    %c0_i32_1 = arith.constant 0 : i32
    return %c0_i32, %c0_i32_0 : i32, i32
  }
  func.func @transform_2(%arg0: i32) -> (i32, i32) {
    %c0_i32 = arith.constant 0 : i32
    %c0_i32_0 = arith.constant 0 : i32
    %c0_i32_1 = arith.constant 0 : i32
    return %c0_i32, %c0_i32_0 : i32, i32
  }
  func.func @transform_3(%arg0: i32) -> (i32, i32) {
    %c0_i32 = arith.constant 0 : i32
    %c0_i32_0 = arith.constant 0 : i32
    %c0_i32_1 = arith.constant 0 : i32
    return %c0_i32, %c0_i32_0 : i32, i32
  }
  func.func @transform_4(%arg0: i32) -> (i32, i32) {
    %c0_i32 = arith.constant 0 : i32
    %c0_i32_0 = arith.constant 0 : i32
    %c0_i32_1 = arith.constant 0 : i32
    return %c0_i32, %c0_i32_0 : i32, i32
  }
  func.func @transform_5(%arg0: i32) -> (i32, i32) {
    %c0_i32 = arith.constant 0 : i32
    %c0_i32_0 = arith.constant 0 : i32
    return %arg0, %c0_i32 : i32, i32
  }
  func.func @transform_6(%arg0: i32) -> (i32, i32) {
    %c0_i32 = arith.constant 0 : i32
    %c0_i32_0 = arith.constant 0 : i32
    return %arg0, %c0_i32 : i32, i32
  }
}

module attributes {stable_mosaic.version = 11 : i64} {
  func.func @_head_kernel(%arg0: i32, %arg1: memref<16x128xf32, #tpu.memory_space<vmem>>, %arg2: memref<128x128xbf16, #tpu.memory_space<vmem>>, %arg3: memref<1x128xf32, #tpu.memory_space<vmem>>, %arg4: memref<128x256xbf16, #tpu.memory_space<vmem>>, %arg5: memref<1x256xf32, #tpu.memory_space<vmem>>, %arg6: memref<16x128xf32, #tpu.memory_space<vmem>>, %arg7: memref<16x128xf32, #tpu.memory_space<vmem>>) attributes {dimension_semantics = [#tpu.dimension_semantics<parallel>], iteration_bounds = array<i64: 1>, scalar_prefetch = 0 : i64, scratch_operands = 0 : i64, tpu.core_type = #tpu.core_type<tc>, window_params = [{transform_indices = @transform_0, window_bounds = array<i64: 16, 128>}, {pipeline_mode = #tpu.pipeline_mode<synchronous>, transform_indices = @transform_1, window_bounds = array<i64: 128, 128>}, {pipeline_mode = #tpu.pipeline_mode<synchronous>, transform_indices = @transform_2, window_bounds = array<i64: 1, 128>}, {pipeline_mode = #tpu.pipeline_mode<synchronous>, transform_indices = @transform_3, window_bounds = array<i64: 128, 256>}, {pipeline_mode = #tpu.pipeline_mode<synchronous>, transform_indices = @transform_4, window_bounds = array<i64: 1, 256>}, {transform_indices = @transform_5, window_bounds = array<i64: 16, 128>}, {transform_indices = @transform_6, window_bounds = array<i64: 16, 128>}]} {
    %c0 = arith.constant 0 : index
    %c0_0 = arith.constant 0 : index
    %0 = vector.load %arg1[%c0, %c0_0] : memref<16x128xf32, #tpu.memory_space<vmem>>, vector<16x128xf32>
    %1 = arith.truncf %0 : vector<16x128xf32> to vector<16x128xbf16>
    %c0_1 = arith.constant 0 : index
    %c0_2 = arith.constant 0 : index
    %2 = vector.load %arg2[%c0_1, %c0_2] : memref<128x128xbf16, #tpu.memory_space<vmem>>, vector<128x128xbf16>
    %cst = arith.constant dense<0.000000e+00> : vector<16x128xf32>
    %3 = tpu.matmul %1, %2, %cst {dimension_numbers = #tpu.dot_dimension_numbers<[1], [0], [0], [1], [0, 0, 1, 1], [], []>} : vector<16x128xbf16>, vector<128x128xbf16>, vector<16x128xf32> -> vector<16x128xf32>
    %c0_3 = arith.constant 0 : index
    %c0_4 = arith.constant 0 : index
    %4 = vector.load %arg3[%c0_3, %c0_4] : memref<1x128xf32, #tpu.memory_space<vmem>>, vector<1x128xf32>
    %5 = vector.broadcast %4 : vector<1x128xf32> to vector<16x128xf32>
    %6 = arith.addf %3, %5 : vector<16x128xf32>
    %cst_5 = arith.constant 0.000000e+00 : f32
    %7 = vector.broadcast %cst_5 : f32 to vector<16x128xf32>
    %8 = arith.maximumf %6, %7 : vector<16x128xf32>
    %9 = arith.truncf %8 : vector<16x128xf32> to vector<16x128xbf16>
    %c0_6 = arith.constant 0 : index
    %c0_7 = arith.constant 0 : index
    %10 = vector.load %arg4[%c0_6, %c0_7] : memref<128x256xbf16, #tpu.memory_space<vmem>>, vector<128x256xbf16>
    %cst_8 = arith.constant dense<0.000000e+00> : vector<16x256xf32>
    %11 = tpu.matmul %9, %10, %cst_8 {dimension_numbers = #tpu.dot_dimension_numbers<[1], [0], [0], [1], [0, 0, 1, 1], [], []>} : vector<16x128xbf16>, vector<128x256xbf16>, vector<16x256xf32> -> vector<16x256xf32>
    %c0_9 = arith.constant 0 : index
    %c0_10 = arith.constant 0 : index
    %12 = vector.load %arg5[%c0_9, %c0_10] : memref<1x256xf32, #tpu.memory_space<vmem>>, vector<1x256xf32>
    %13 = vector.broadcast %12 : vector<1x256xf32> to vector<16x256xf32>
    %14 = arith.addf %11, %13 : vector<16x256xf32>
    %15 = vector.extract_strided_slice %14 {offsets = [0, 0], sizes = [16, 128], strides = [1, 1]} : vector<16x256xf32> to vector<16x128xf32>
    %16 = vector.extract_strided_slice %14 {offsets = [0, 128], sizes = [16, 128], strides = [1, 1]} : vector<16x256xf32> to vector<16x128xf32>
    %c0_11 = arith.constant 0 : index
    %c0_12 = arith.constant 0 : index
    %17 = vector.load %arg6[%c0_11, %c0_12] : memref<16x128xf32, #tpu.memory_space<vmem>>, vector<16x128xf32>
    tpu.vector_store %arg6[%c0_11, %c0_12], %15 {strides = array<i32>} : memref<16x128xf32, #tpu.memory_space<vmem>>, vector<16x128xf32>,
    %cst_13 = arith.constant 0.000000e+00 : f32
    %18 = vector.broadcast %cst_13 : f32 to vector<16x128xf32>
    %19 = arith.maximumf %16, %18 : vector<16x128xf32>
    %20 = math.absf %16 : vector<16x128xf32>
    %cst_14 = arith.constant 0.000000e+00 : f32
    %21 = vector.broadcast %cst_14 : f32 to vector<16x128xf32>
    %22 = arith.subf %21, %20 : vector<16x128xf32>
    %23 = math.exp %22 : vector<16x128xf32>
    %24 = math.log1p %23 : vector<16x128xf32>
    %25 = arith.addf %19, %24 : vector<16x128xf32>
    %c0_15 = arith.constant 0 : index
    %c0_16 = arith.constant 0 : index
    %26 = vector.load %arg7[%c0_15, %c0_16] : memref<16x128xf32, #tpu.memory_space<vmem>>, vector<16x128xf32>
    tpu.vector_store %arg7[%c0_15, %c0_16], %25 {strides = array<i32>} : memref<16x128xf32, #tpu.memory_space<vmem>>, vector<16x128xf32>,
    return
  }
  func.func @transform_0(%arg0: i32) -> (i32, i32) {
    %c0_i32 = arith.constant 0 : i32
    %c0_i32_0 = arith.constant 0 : i32
    return %arg0, %c0_i32 : i32, i32
  }
  func.func @transform_1(%arg0: i32) -> (i32, i32) {
    %c0_i32 = arith.constant 0 : i32
    %c0_i32_0 = arith.constant 0 : i32
    %c0_i32_1 = arith.constant 0 : i32
    return %c0_i32, %c0_i32_0 : i32, i32
  }
  func.func @transform_2(%arg0: i32) -> (i32, i32) {
    %c0_i32 = arith.constant 0 : i32
    %c0_i32_0 = arith.constant 0 : i32
    %c0_i32_1 = arith.constant 0 : i32
    return %c0_i32, %c0_i32_0 : i32, i32
  }
  func.func @transform_3(%arg0: i32) -> (i32, i32) {
    %c0_i32 = arith.constant 0 : i32
    %c0_i32_0 = arith.constant 0 : i32
    %c0_i32_1 = arith.constant 0 : i32
    return %c0_i32, %c0_i32_0 : i32, i32
  }
  func.func @transform_4(%arg0: i32) -> (i32, i32) {
    %c0_i32 = arith.constant 0 : i32
    %c0_i32_0 = arith.constant 0 : i32
    %c0_i32_1 = arith.constant 0 : i32
    return %c0_i32, %c0_i32_0 : i32, i32
  }
  func.func @transform_5(%arg0: i32) -> (i32, i32) {
    %c0_i32 = arith.constant 0 : i32
    %c0_i32_0 = arith.constant 0 : i32
    return %arg0, %c0_i32 : i32, i32
  }
  func.func @transform_6(%arg0: i32) -> (i32, i32) {
    %c0_i32 = arith.constant 0 : i32
    %c0_i32_0 = arith.constant 0 : i32
    return %arg0, %c0_i32 : i32, i32
  }
}

</mosaic_0001>

<llo_original>
// kernel: rnn_model_forward.7
$region0: #{rnn_model_forward.7}
  #allocation0 [shape = 'u32[]', space=smem, size = 0x4, offset = 0x4, fixed_abs, tag = 'smem constant byte address 0x4 - core index']
  #allocation1 [shape = 'u32[144,128]{1,0:T(1,128)}', space=vmem, size = 0x12000, scoped, tag = 'internal scratch']
  %s0 = inlined_call_operand.vmem [shape: bf16[128,128], index: 0, kind: input, shape index: {}]
  %s1 = inlined_call_operand.vmem [shape: bf16[128,128], index: 1, kind: input, shape index: {}]
  %s2 = inlined_call_operand.vmem [shape: f32[1,128], index: 2, kind: input, shape index: {}]
  %s3 = inlined_call_operand.vmem [shape: bf16[128,256], index: 3, kind: input, shape index: {}]
  %s4 = inlined_call_operand.vmem [shape: f32[1,256], index: 4, kind: input, shape index: {}]
  %s5 = inlined_call_operand.vmem [shape: f32[128,128], index: 5, kind: output, shape index: {0}]
  %s6 = inlined_call_operand.vmem [shape: f32[128,128], index: 6, kind: output, shape index: {1}]
  %7 = xla_tuple %s5, %s6
  %s8 = sld [smem:[#allocation0]]
  $region38: #{rnn_model_forward.7} parent=0
    _
  %s10 = ssub.s32 1, %s8
  %s11 = scalar_select 0, %s10, %s8
  // Predicated region
  $region2: #{rnn_model_forward.7} parent=0 // pred_check
    _
  $region3: #{rnn_model_forward.7} parent=0 // pred_check_branch
    %13 = sbr.rel (0) target = $region5
  $region4: #{rnn_model_forward.7} parent=0 // pred_region
    _
  $region5: #{rnn_model_forward.7} parent=0 // pred_fallthru
    _
  // Predicated region
  $region6: #{rnn_model_forward.7} parent=0 // pred_check
    _
  $region7: #{rnn_model_forward.7} parent=0 // pred_check_branch
    %15 = sbr.rel (0) target = $region9
  $region8: #{rnn_model_forward.7} parent=0 // pred_region
    _
  $region9: #{rnn_model_forward.7} parent=0 // pred_fallthru
    _
  // Predicated region
  $region10: #{rnn_model_forward.7} parent=0 // pred_check
    _
  $region11: #{rnn_model_forward.7} parent=0 // pred_check_branch
    %17 = sbr.rel (0) target = $region13
  $region12: #{rnn_model_forward.7} parent=0 // pred_region
    _
  $region13: #{rnn_model_forward.7} parent=0 // pred_fallthru
    _
  // Predicated region
  $region14: #{rnn_model_forward.7} parent=0 // pred_check
    _
  $region15: #{rnn_model_forward.7} parent=0 // pred_check_branch
    %19 = sbr.rel (0) target = $region17
  $region16: #{rnn_model_forward.7} parent=0 // pred_region
    _
  $region17: #{rnn_model_forward.7} parent=0 // pred_fallthru
    _
  // Predicated region
  $region18: #{rnn_model_forward.7} parent=0 // pred_check
    _
  $region19: #{rnn_model_forward.7} parent=0 // pred_check_branch
    %21 = sbr.rel (0) target = $region21
  $region20: #{rnn_model_forward.7} parent=0 // pred_region
    _
  $region21: #{rnn_model_forward.7} parent=0 // pred_fallthru
    _
  %v23 = vld [vmem:[%s0] sm:$0xf]
  %v24 = vld [vmem:[%s0 + $0x4] sm:$0xf]
  %v25 = vld [vmem:[%s0 + $0x8] sm:$0xf]
  %v26 = vld [vmem:[%s0 + $0xc] sm:$0xf]
  %v27 = vld [vmem:[%s0 + $0x10] sm:$0xf]
  %v28 = vld [vmem:[%s0 + $0x14] sm:$0xf]
  %v29 = vld [vmem:[%s0 + $0x18] sm:$0xf]
  %v30 = vld [vmem:[%s0 + $0x1c] sm:$0xf]
  %v31 = vld [vmem:[%s0 + $0x20] sm:$0xf]
  %v32 = vld [vmem:[%s0 + $0x24] sm:$0xf]
  %v33 = vld [vmem:[%s0 + $0x28] sm:$0xf]
  %v34 = vld [vmem:[%s0 + $0x2c] sm:$0xf]
  %v35 = vld [vmem:[%s0 + $0x30] sm:$0xf]
  %v36 = vld [vmem:[%s0 + $0x34] sm:$0xf]
  %v37 = vld [vmem:[%s0 + $0x38] sm:$0xf]
  %v38 = vld [vmem:[%s0 + $0x3c] sm:$0xf]
  %v39 = vld [vmem:[%s1] sm:$0xf]
  %v40 = vld [vmem:[%s1 + $0x4] sm:$0xf]
  %v41 = vld [vmem:[%s1 + $0x8] sm:$0xf]
  %v42 = vld [vmem:[%s1 + $0xc] sm:$0xf]
  %v43 = vld [vmem:[%s1 + $0x10] sm:$0xf]
  %v44 = vld [vmem:[%s1 + $0x14] sm:$0xf]
  %v45 = vld [vmem:[%s1 + $0x18] sm:$0xf]
  %v46 = vld [vmem:[%s1 + $0x1c] sm:$0xf]
  %v47 = vld [vmem:[%s1 + $0x20] sm:$0xf]
  %v48 = vld [vmem:[%s1 + $0x24] sm:$0xf]
  %v49 = vld [vmem:[%s1 + $0x28] sm:$0xf]
  %v50 = vld [vmem:[%s1 + $0x2c] sm:$0xf]
  %v51 = vld [vmem:[%s1 + $0x30] sm:$0xf]
  %v52 = vld [vmem:[%s1 + $0x34] sm:$0xf]
  %v53 = vld [vmem:[%s1 + $0x38] sm:$0xf]
  %v54 = vld [vmem:[%s1 + $0x3c] sm:$0xf]
  %v55 = vld [vmem:[%s2] sm:$0x1]
  %v57 = vlaneseq
  %v58 = vshrl.u32 %v57, 7
  %v59 = vsub.s32 0, %v58
  %v60 = vrot.slane %v55, %v59
  %v78 = vunpack.c.l.b16 %v23
  %v79 = vunpack.c.l.b16 %v24
  %v80 = vunpack.c.l.b16 %v25
  %v81 = vunpack.c.l.b16 %v26
  %v82 = vunpack.c.l.b16 %v27
  %v83 = vunpack.c.l.b16 %v28
  %v84 = vunpack.c.l.b16 %v29
  %v85 = vunpack.c.l.b16 %v30
  %v86 = vunpack.c.l.b16 %v31
  %v87 = vunpack.c.l.b16 %v32
  %v88 = vunpack.c.l.b16 %v33
  %v89 = vunpack.c.l.b16 %v34
  %v90 = vunpack.c.l.b16 %v35
  %v91 = vunpack.c.l.b16 %v36
  %v92 = vunpack.c.l.b16 %v37
  %v93 = vunpack.c.l.b16 %v38
  %v94 = vpack.c.b16 %v79, %v78
  %v95 = vpack.c.b16 %v81, %v80
  %v96 = vpack.c.b16 %v83, %v82
  %v97 = vpack.c.b16 %v85, %v84
  %v98 = vpack.c.b16 %v87, %v86
  %v99 = vpack.c.b16 %v89, %v88
  %v100 = vpack.c.b16 %v91, %v90
  %v101 = vpack.c.b16 %v93, %v92
  %v126 = vunpack.c.l.b16 %v39
  %v127 = vunpack.c.l.b16 %v40
  %v128 = vunpack.c.l.b16 %v41
  %v129 = vunpack.c.l.b16 %v42
  %v130 = vunpack.c.l.b16 %v43
  %v131 = vunpack.c.l.b16 %v44
  %v132 = vunpack.c.l.b16 %v45
  %v133 = vunpack.c.l.b16 %v46
  %v134 = vunpack.c.l.b16 %v47
  %v135 = vunpack.c.l.b16 %v48
  %v136 = vunpack.c.l.b16 %v49
  %v137 = vunpack.c.l.b16 %v50
  %v138 = vunpack.c.l.b16 %v51
  %v139 = vunpack.c.l.b16 %v52
  %v140 = vunpack.c.l.b16 %v53
  %v141 = vunpack.c.l.b16 %v54
  %v142 = vpack.c.b16 %v127, %v126
  %v143 = vpack.c.b16 %v129, %v128
  %v144 = vpack.c.b16 %v131, %v130
  %v145 = vpack.c.b16 %v133, %v132
  %v146 = vpack.c.b16 %v135, %v134
  %v147 = vpack.c.b16 %v137, %v136
  %v148 = vpack.c.b16 %v139, %v138
  %v149 = vpack.c.b16 %v141, %v140
  %158 = vmatprep.subr.bf16.mxu0 0
  %159 = vmatpush1.bf16.msra.mxu0 %v149
  %160 = vmatprep.subr.bf16.mxu0 0
  %161 = vmatpush1.bf16.msra.mxu0 %v148
  %162 = vmatprep.subr.bf16.mxu0 0
  %163 = vmatpush1.bf16.msra.mxu0 %v147
  %164 = vmatprep.subr.bf16.mxu0 0
  %165 = vmatpush1.bf16.msra.mxu0 %v146
  %166 = vmatprep.subr.bf16.mxu0 0
  %167 = vmatpush1.bf16.msra.mxu0 %v145
  %168 = vmatprep.subr.bf16.mxu0 0
  %169 = vmatpush1.bf16.msra.mxu0 %v144
  %170 = vmatprep.subr.bf16.mxu0 0
  %171 = vmatpush1.bf16.msra.mxu0 %v143
  %172 = vmatprep.subr.bf16.mxu0 0
  %173 = vmatpush1.bf16.msra.mxu0 %v142
  %174 = vmatprep.subr.bf16.mxu0 0
  %175 = vmatpush2.bf16.msra.mxu0 0
  %176 = vmatprep.subr.bf16.mxu0 0
  %177 = vmatpush2.bf16.msra.mxu0 0
  %178 = vmatprep.subr.bf16.mxu0 0
  %179 = vmatpush2.bf16.msra.mxu0 0
  %180 = vmatprep.subr.bf16.mxu0 0
  %181 = vmatpush2.bf16.msra.mxu0 0
  %182 = vmatprep.subr.bf16.mxu0 0
  %183 = vmatpush2.bf16.msra.mxu0 0
  %184 = vmatprep.subr.bf16.mxu0 0
  %185 = vmatpush2.bf16.msra.mxu0 0
  %186 = vmatprep.subr.bf16.mxu0 0
  %187 = vmatpush2.bf16.msra.mxu0 0
  %188 = vmatprep.subr.bf16.mxu0 0
  %189 = vmatpush2.bf16.msra.mxu0 0
  %190 = vmatprep.mubr.bf16.mxu0 0
  %191 = vmatmul.mubr.bf16.gmra.mxu0 %v94
  %v192 = vpop.f32.mrf.mxu0
  %v193 = vadd.f32 %v60, %v192
  %v194 = vpop.f32.mrf.mxu0
  %v195 = vpop.f32.mrf.mxu0
  %v196 = vadd.f32 %v60, %v195
  %v197 = vpop.f32.mrf.mxu0
  %198 = vmatprep.mubr.bf16.mxu0 0
  %199 = vmatmul.mubr.bf16.gmra.mxu0 %v95
  %v200 = vpop.f32.mrf.mxu0
  %v201 = vadd.f32 %v60, %v200
  %v202 = vpop.f32.mrf.mxu0
  %v203 = vpop.f32.mrf.mxu0
  %v204 = vadd.f32 %v60, %v203
  %v205 = vpop.f32.mrf.mxu0
  %206 = vmatprep.mubr.bf16.mxu0 0
  %207 = vmatmul.mubr.bf16.gmra.mxu0 %v96
  %v208 = vpop.f32.mrf.mxu0
  %v209 = vadd.f32 %v60, %v208
  %v210 = vpop.f32.mrf.mxu0
  %v211 = vpop.f32.mrf.mxu0
  %v212 = vadd.f32 %v60, %v211
  %v213 = vpop.f32.mrf.mxu0
  %214 = vmatprep.mubr.bf16.mxu0 0
  %215 = vmatmul.mubr.bf16.gmra.mxu0 %v97
  %v216 = vpop.f32.mrf.mxu0
  %v217 = vadd.f32 %v60, %v216
  %v218 = vpop.f32.mrf.mxu0
  %v219 = vpop.f32.mrf.mxu0
  %v220 = vadd.f32 %v60, %v219
  %v221 = vpop.f32.mrf.mxu0
  %222 = vmatprep.mubr.bf16.mxu0 0
  %223 = vmatmul.mubr.bf16.gmra.mxu0 %v98
  %v224 = vpop.f32.mrf.mxu0
  %v225 = vadd.f32 %v60, %v224
  %v226 = vpop.f32.mrf.mxu0
  %v227 = vpop.f32.mrf.mxu0
  %v228 = vadd.f32 %v60, %v227
  %v229 = vpop.f32.mrf.mxu0
  %230 = vmatprep.mubr.bf16.mxu0 0
  %231 = vmatmul.mubr.bf16.gmra.mxu0 %v99
  %v232 = vpop.f32.mrf.mxu0
  %v233 = vadd.f32 %v60, %v232
  %v234 = vpop.f32.mrf.mxu0
  %v235 = vpop.f32.mrf.mxu0
  %v236 = vadd.f32 %v60, %v235
  %v237 = vpop.f32.mrf.mxu0
  %238 = vmatprep.mubr.bf16.mxu0 0
  %239 = vmatmul.mubr.bf16.gmra.mxu0 %v100
  %v240 = vpop.f32.mrf.mxu0
  %v241 = vadd.f32 %v60, %v240
  %v242 = vpop.f32.mrf.mxu0
  %v243 = vpop.f32.mrf.mxu0
  %v244 = vadd.f32 %v60, %v243
  %v245 = vpop.f32.mrf.mxu0
  %246 = vmatprep.mubr.bf16.mxu0 0
  %247 = vmatmul.mubr.bf16.gmra.mxu0 %v101
  %v248 = vpop.f32.mrf.mxu0
  %v249 = vadd.f32 %v60, %v248
  %v250 = vpop.f32.mrf.mxu0
  %v251 = vpop.f32.mrf.mxu0
  %v252 = vadd.f32 %v60, %v251
  %v253 = vpop.f32.mrf.mxu0
  %254 = vdwg.mxu0
  %v255 = vmax.f32 %v193, 0.0
  %v256 = vmax.f32 %v196, 0.0
  %v257 = vmax.f32 %v201, 0.0
  %v258 = vmax.f32 %v204, 0.0
  %v259 = vmax.f32 %v209, 0.0
  %v260 = vmax.f32 %v212, 0.0
  %v261 = vmax.f32 %v217, 0.0
  %v262 = vmax.f32 %v220, 0.0
  %v263 = vmax.f32 %v225, 0.0
  %v264 = vmax.f32 %v228, 0.0
  %v265 = vmax.f32 %v233, 0.0
  %v266 = vmax.f32 %v236, 0.0
  %v267 = vmax.f32 %v241, 0.0
  %v268 = vmax.f32 %v244, 0.0
  %v269 = vmax.f32 %v249, 0.0
  %v270 = vmax.f32 %v252, 0.0
  %v271 = vpack.c.bf16 %v256, %v255
  %v272 = vpack.c.bf16 %v258, %v257
  %v273 = vpack.c.bf16 %v260, %v259
  %v274 = vpack.c.bf16 %v262, %v261
  %v275 = vpack.c.bf16 %v264, %v263
  %v276 = vpack.c.bf16 %v266, %v265
  %v277 = vpack.c.bf16 %v268, %v267
  %v278 = vpack.c.bf16 %v270, %v269
  %v279 = vld [vmem:[%s3] sm:$0xff]
  %v280 = vld [vmem:[%s3 + $0x8] sm:$0xff]
  %v281 = vld [vmem:[%s3 + $0x10] sm:$0xff]
  %v282 = vld [vmem:[%s3 + $0x18] sm:$0xff]
  %v283 = vld [vmem:[%s3 + $0x20] sm:$0xff]
  %v284 = vld [vmem:[%s3 + $0x28] sm:$0xff]
  %v285 = vld [vmem:[%s3 + $0x30] sm:$0xff]
  %v286 = vld [vmem:[%s3 + $0x38] sm:$0xff]
  %v287 = vld [vmem:[%s3 + $0x40] sm:$0xff]
  %v288 = vld [vmem:[%s3 + $0x48] sm:$0xff]
  %v289 = vld [vmem:[%s3 + $0x50] sm:$0xff]
  %v290 = vld [vmem:[%s3 + $0x58] sm:$0xff]
  %v291 = vld [vmem:[%s3 + $0x60] sm:$0xff]
  %v292 = vld [vmem:[%s3 + $0x68] sm:$0xff]
  %v293 = vld [vmem:[%s3 + $0x70] sm:$0xff]
  %v294 = vld [vmem:[%s3 + $0x78] sm:$0xff]
  %v295 = vld [vmem:[%s4] sm:$0x3]
  %v297 = vlaneseq
  %v298 = vshrl.u32 %v297, 7
  %v299 = vsub.s32 0, %v298
  %v300 = vrot.slane %v295, %v299
  %v301 = vlaneseq
  %v302 = vshrl.u32 %v301, 7
  %v303 = vsub.s32 1, %v302
  %v304 = vrot.slane %v295, %v303
  %v323 = vunpack.c.l.b16 %v279
  %v324 = vunpack.c.h.b16 %v279
  %v325 = vunpack.c.l.b16 %v280
  %v326 = vunpack.c.h.b16 %v280
  %v327 = vunpack.c.l.b16 %v281
  %v328 = vunpack.c.h.b16 %v281
  %v329 = vunpack.c.l.b16 %v282
  %v330 = vunpack.c.h.b16 %v282
  %v331 = vunpack.c.l.b16 %v283
  %v332 = vunpack.c.h.b16 %v283
  %v333 = vunpack.c.l.b16 %v284
  %v334 = vunpack.c.h.b16 %v284
  %v335 = vunpack.c.l.b16 %v285
  %v336 = vunpack.c.h.b16 %v285
  %v337 = vunpack.c.l.b16 %v286
  %v338 = vunpack.c.h.b16 %v286
  %v339 = vunpack.c.l.b16 %v287
  %v340 = vunpack.c.h.b16 %v287
  %v341 = vunpack.c.l.b16 %v288
  %v342 = vunpack.c.h.b16 %v288
  %v343 = vunpack.c.l.b16 %v289
  %v344 = vunpack.c.h.b16 %v289
  %v345 = vunpack.c.l.b16 %v290
  %v346 = vunpack.c.h.b16 %v290
  %v347 = vunpack.c.l.b16 %v291
  %v348 = vunpack.c.h.b16 %v291
  %v349 = vunpack.c.l.b16 %v292
  %v350 = vunpack.c.h.b16 %v292
  %v351 = vunpack.c.l.b16 %v293
  %v352 = vunpack.c.h.b16 %v293
  %v353 = vunpack.c.l.b16 %v294
  %v354 = vunpack.c.h.b16 %v294
  %v355 = vpack.c.b16 %v325, %v323
  %v356 = vpack.c.b16 %v326, %v324
  %v357 = vpack.c.b16 %v329, %v327
  %v358 = vpack.c.b16 %v330, %v328
  %v359 = vpack.c.b16 %v333, %v331
  %v360 = vpack.c.b16 %v334, %v332
  %v361 = vpack.c.b16 %v337, %v335
  %v362 = vpack.c.b16 %v338, %v336
  %v363 = vpack.c.b16 %v341, %v339
  %v364 = vpack.c.b16 %v342, %v340
  %v365 = vpack.c.b16 %v345, %v343
  %v366 = vpack.c.b16 %v346, %v344
  %v367 = vpack.c.b16 %v349, %v347
  %v368 = vpack.c.b16 %v350, %v348
  %v369 = vpack.c.b16 %v353, %v351
  %v370 = vpack.c.b16 %v354, %v352
  %387 = vmatprep.subr.bf16.mxu0 %v370
  %388 = vmatpush1.bf16.msra.mxu0 %v369
  %389 = vmatprep.subr.bf16.mxu0 %v368
  %390 = vmatpush1.bf16.msra.mxu0 %v367
  %391 = vmatprep.subr.bf16.mxu0 %v366
  %392 = vmatpush1.bf16.msra.mxu0 %v365
  %393 = vmatprep.subr.bf16.mxu0 %v364
  %394 = vmatpush1.bf16.msra.mxu0 %v363
  %395 = vmatprep.subr.bf16.mxu0 %v362
  %396 = vmatpush1.bf16.msra.mxu0 %v361
  %397 = vmatprep.subr.bf16.mxu0 %v360
  %398 = vmatpush1.bf16.msra.mxu0 %v359
  %399 = vmatprep.subr.bf16.mxu0 %v358
  %400 = vmatpush1.bf16.msra.mxu0 %v357
  %401 = vmatprep.subr.bf16.mxu0 %v356
  %402 = vmatpush1.bf16.msra.mxu0 %v355
  %403 = vmatprep.subr.bf16.mxu0 0
  %404 = vmatpush2.bf16.msra.mxu0 0
  %405 = vmatprep.subr.bf16.mxu0 0
  %406 = vmatpush2.bf16.msra.mxu0 0
  %407 = vmatprep.subr.bf16.mxu0 0
  %408 = vmatpush2.bf16.msra.mxu0 0
  %409 = vmatprep.subr.bf16.mxu0 0
  %410 = vmatpush2.bf16.msra.mxu0 0
  %411 = vmatprep.subr.bf16.mxu0 0
  %412 = vmatpush2.bf16.msra.mxu0 0
  %413 = vmatprep.subr.bf16.mxu0 0
  %414 = vmatpush2.bf16.msra.mxu0 0
  %415 = vmatprep.subr.bf16.mxu0 0
  %416 = vmatpush2.bf16.msra.mxu0 0
  %417 = vmatprep.subr.bf16.mxu0 0
  %418 = vmatpush2.bf16.msra.mxu0 0
  %419 = vmatprep.mubr.bf16.mxu0 0
  %420 = vmatmul.mubr.bf16.gmra.mxu0 %v271
  %v421 = vpop.f32.mrf.mxu0
  %v422 = vadd.f32 %v300, %v421
  %v423 = vpop.f32.mrf.mxu0
  %v424 = vadd.f32 %v304, %v423
  %v425 = vpop.f32.mrf.mxu0
  %v426 = vadd.f32 %v300, %v425
  %v427 = vpop.f32.mrf.mxu0
  %v428 = vadd.f32 %v304, %v427
  %429 = vmatprep.mubr.bf16.mxu0 0
  %430 = vmatmul.mubr.bf16.gmra.mxu0 %v272
  %v431 = vpop.f32.mrf.mxu0
  %v432 = vadd.f32 %v300, %v431
  %v433 = vpop.f32.mrf.mxu0
  %v434 = vadd.f32 %v304, %v433
  %v435 = vpop.f32.mrf.mxu0
  %v436 = vadd.f32 %v300, %v435
  %v437 = vpop.f32.mrf.mxu0
  %v438 = vadd.f32 %v304, %v437
  %439 = vmatprep.mubr.bf16.mxu0 0
  %440 = vmatmul.mubr.bf16.gmra.mxu0 %v273
  %v441 = vpop.f32.mrf.mxu0
  %v442 = vadd.f32 %v300, %v441
  %v443 = vpop.f32.mrf.mxu0
  %v444 = vadd.f32 %v304, %v443
  %v445 = vpop.f32.mrf.mxu0
  %v446 = vadd.f32 %v300, %v445
  %v447 = vpop.f32.mrf.mxu0
  %v448 = vadd.f32 %v304, %v447
  %449 = vmatprep.mubr.bf16.mxu0 0
  %450 = vmatmul.mubr.bf16.gmra.mxu0 %v274
  %v451 = vpop.f32.mrf.mxu0
  %v452 = vadd.f32 %v300, %v451
  %v453 = vpop.f32.mrf.mxu0
  %v454 = vadd.f32 %v304, %v453
  %v455 = vpop.f32.mrf.mxu0
  %v456 = vadd.f32 %v300, %v455
  %v457 = vpop.f32.mrf.mxu0
  %v458 = vadd.f32 %v304, %v457
  %459 = vmatprep.mubr.bf16.mxu0 0
  %460 = vmatmul.mubr.bf16.gmra.mxu0 %v275
  %v461 = vpop.f32.mrf.mxu0
  %v462 = vadd.f32 %v300, %v461
  %v463 = vpop.f32.mrf.mxu0
  %v464 = vadd.f32 %v304, %v463
  %v465 = vpop.f32.mrf.mxu0
  %v466 = vadd.f32 %v300, %v465
  %v467 = vpop.f32.mrf.mxu0
  %v468 = vadd.f32 %v304, %v467
  %469 = vmatprep.mubr.bf16.mxu0 0
  %470 = vmatmul.mubr.bf16.gmra.mxu0 %v276
  %v471 = vpop.f32.mrf.mxu0
  %v472 = vadd.f32 %v300, %v471
  %v473 = vpop.f32.mrf.mxu0
  %v474 = vadd.f32 %v304, %v473
  %v475 = vpop.f32.mrf.mxu0
  %v476 = vadd.f32 %v300, %v475
  %v477 = vpop.f32.mrf.mxu0
  %v478 = vadd.f32 %v304, %v477
  %479 = vmatprep.mubr.bf16.mxu0 0
  %480 = vmatmul.mubr.bf16.gmra.mxu0 %v277
  %v481 = vpop.f32.mrf.mxu0
  %v482 = vadd.f32 %v300, %v481
  %v483 = vpop.f32.mrf.mxu0
  %v484 = vadd.f32 %v304, %v483
  %v485 = vpop.f32.mrf.mxu0
  %v486 = vadd.f32 %v300, %v485
  %v487 = vpop.f32.mrf.mxu0
  %v488 = vadd.f32 %v304, %v487
  %489 = vmatprep.mubr.bf16.mxu0 0
  %490 = vmatmul.mubr.bf16.gmra.mxu0 %v278
  %v491 = vpop.f32.mrf.mxu0
  %v492 = vadd.f32 %v300, %v491
  %v493 = vpop.f32.mrf.mxu0
  %v494 = vadd.f32 %v304, %v493
  %v495 = vpop.f32.mrf.mxu0
  %v496 = vadd.f32 %v300, %v495
  %v497 = vpop.f32.mrf.mxu0
  %v498 = vadd.f32 %v304, %v497
  %499 = vdwg.mxu0
  %500 = vst [vmem:[%s5] sm:$0xff] %v422
  %501 = vst [vmem:[%s5 + $0x8] sm:$0xff] %v426
  %502 = vst [vmem:[%s5 + $0x10] sm:$0xff] %v432
  %503 = vst [vmem:[%s5 + $0x18] sm:$0xff] %v436
  %504 = vst [vmem:[%s5 + $0x20] sm:$0xff] %v442
  %505 = vst [vmem:[%s5 + $0x28] sm:$0xff] %v446
  %506 = vst [vmem:[%s5 + $0x30] sm:$0xff] %v452
  %507 = vst [vmem:[%s5 + $0x38] sm:$0xff] %v456
  %508 = vst [vmem:[%s5 + $0x40] sm:$0xff] %v462
  %509 = vst [vmem:[%s5 + $0x48] sm:$0xff] %v466
  %510 = vst [vmem:[%s5 + $0x50] sm:$0xff] %v472
  %511 = vst [vmem:[%s5 + $0x58] sm:$0xff] %v476
  %512 = vst [vmem:[%s5 + $0x60] sm:$0xff] %v482
  %513 = vst [vmem:[%s5 + $0x68] sm:$0xff] %v486
  %514 = vst [vmem:[%s5 + $0x70] sm:$0xff] %v492
  %515 = vst [vmem:[%s5 + $0x78] sm:$0xff] %v496
  %v516 = vmax.f32 %v424, 0.0
  %v517 = vmax.f32 %v428, 0.0
  %v518 = vmax.f32 %v434, 0.0
  %v519 = vmax.f32 %v438, 0.0
  %v520 = vmax.f32 %v444, 0.0
  %v521 = vmax.f32 %v448, 0.0
  %v522 = vmax.f32 %v454, 0.0
  %v523 = vmax.f32 %v458, 0.0
  %v524 = vmax.f32 %v464, 0.0
  %v525 = vmax.f32 %v468, 0.0
  %v526 = vmax.f32 %v474, 0.0
  %v527 = vmax.f32 %v478, 0.0
  %v528 = vmax.f32 %v484, 0.0
  %v529 = vmax.f32 %v488, 0.0
  %v530 = vmax.f32 %v494, 0.0
  %v531 = vmax.f32 %v498, 0.0
  %v532 = vand.u32 2147483647, %v424
  %v533 = vand.u32 2147483647, %v428
  %v534 = vand.u32 2147483647, %v434
  %v535 = vand.u32 2147483647, %v438
  %v536 = vand.u32 2147483647, %v444
  %v537 = vand.u32 2147483647, %v448
  %v538 = vand.u32 2147483647, %v454
  %v539 = vand.u32 2147483647, %v458
  %v540 = vand.u32 2147483647, %v464
  %v541 = vand.u32 2147483647, %v468
  %v542 = vand.u32 2147483647, %v474
  %v543 = vand.u32 2147483647, %v478
  %v544 = vand.u32 2147483647, %v484
  %v545 = vand.u32 2147483647, %v488
  %v546 = vand.u32 2147483647, %v494
  %v547 = vand.u32 2147483647, %v498
  %v548 = vsub.f32 0.0, %v532
  %v549 = vsub.f32 0.0, %v533
  %v550 = vsub.f32 0.0, %v534
  %v551 = vsub.f32 0.0, %v535
  %v552 = vsub.f32 0.0, %v536
  %v553 = vsub.f32 0.0, %v537
  %v554 = vsub.f32 0.0, %v538
  %v555 = vsub.f32 0.0, %v539
  %v556 = vsub.f32 0.0, %v540
  %v557 = vsub.f32 0.0, %v541
  %v558 = vsub.f32 0.0, %v542
  %v559 = vsub.f32 0.0, %v543
  %v560 = vsub.f32 0.0, %v544
  %v561 = vsub.f32 0.0, %v545
  %v562 = vsub.f32 0.0, %v546
  %v563 = vsub.f32 0.0, %v547
  %v564 = vmul.f32 %v548, 1.442695
  %v565 = vpow.pop %v564
  %v566 = vmul.f32 %v549, 1.442695
  %v567 = vpow.pop %v566
  %v568 = vmul.f32 %v550, 1.442695
  %v569 = vpow.pop %v568
  %v570 = vmul.f32 %v551, 1.442695
  %v571 = vpow.pop %v570
  %v572 = vmul.f32 %v552, 1.442695
  %v573 = vpow.pop %v572
  %v574 = vmul.f32 %v553, 1.442695
  %v575 = vpow.pop %v574
  %v576 = vmul.f32 %v554, 1.442695
  %v577 = vpow.pop %v576
  %v578 = vmul.f32 %v555, 1.442695
  %v579 = vpow.pop %v578
  %v580 = vmul.f32 %v556, 1.442695
  %v581 = vpow.pop %v580
  %v582 = vmul.f32 %v557, 1.442695
  %v583 = vpow.pop %v582
  %v584 = vmul.f32 %v558, 1.442695
  %v585 = vpow.pop %v584
  %v586 = vmul.f32 %v559, 1.442695
  %v587 = vpow.pop %v586
  %v588 = vmul.f32 %v560, 1.442695
  %v589 = vpow.pop %v588
  %v590 = vmul.f32 %v561, 1.442695
  %v591 = vpow.pop %v590
  %v592 = vmul.f32 %v562, 1.442695
  %v593 = vpow.pop %v592
  %v594 = vmul.f32 %v563, 1.442695
  %v595 = vpow.pop %v594
  %v596 = vadd.f32 %v565, 1.0
  %v597 = vlog2.pop %v596
  %v598 = vmul.f32 %v597, 0.6931472
  %v599 = vmul.f32 -0.5, %v565
  %v600 = vadd.f32 %v599, 1.0
  %v601 = vmul.f32 %v600, %v565
  %v602 = vand.u32 2147483647, %v565
  %vm603 = vcmp.lt.f32.partialorder %v602, 0.0004427343
  %v604 = vsel %vm603, %v601, %v598
  %v605 = vadd.f32 %v567, 1.0
  %v606 = vlog2.pop %v605
  %v607 = vmul.f32 %v606, 0.6931472
  %v608 = vmul.f32 -0.5, %v567
  %v609 = vadd.f32 %v608, 1.0
  %v610 = vmul.f32 %v609, %v567
  %v611 = vand.u32 2147483647, %v567
  %vm612 = vcmp.lt.f32.partialorder %v611, 0.0004427343
  %v613 = vsel %vm612, %v610, %v607
  %v614 = vadd.f32 %v569, 1.0
  %v615 = vlog2.pop %v614
  %v616 = vmul.f32 %v615, 0.6931472
  %v617 = vmul.f32 -0.5, %v569
  %v618 = vadd.f32 %v617, 1.0
  %v619 = vmul.f32 %v618, %v569
  %v620 = vand.u32 2147483647, %v569
  %vm621 = vcmp.lt.f32.partialorder %v620, 0.0004427343
  %v622 = vsel %vm621, %v619, %v616
  %v623 = vadd.f32 %v571, 1.0
  %v624 = vlog2.pop %v623
  %v625 = vmul.f32 %v624, 0.6931472
  %v626 = vmul.f32 -0.5, %v571
  %v627 = vadd.f32 %v626, 1.0
  %v628 = vmul.f32 %v627, %v571
  %v629 = vand.u32 2147483647, %v571
  %vm630 = vcmp.lt.f32.partialorder %v629, 0.0004427343
  %v631 = vsel %vm630, %v628, %v625
  %v632 = vadd.f32 %v573, 1.0
  %v633 = vlog2.pop %v632
  %v634 = vmul.f32 %v633, 0.6931472
  %v635 = vmul.f32 -0.5, %v573
  %v636 = vadd.f32 %v635, 1.0
  %v637 = vmul.f32 %v636, %v573
  %v638 = vand.u32 2147483647, %v573
  %vm639 = vcmp.lt.f32.partialorder %v638, 0.0004427343
  %v640 = vsel %vm639, %v637, %v634
  %v641 = vadd.f32 %v575, 1.0
  %v642 = vlog2.pop %v641
  %v643 = vmul.f32 %v642, 0.6931472
  %v644 = vmul.f32 -0.5, %v575
  %v645 = vadd.f32 %v644, 1.0
  %v646 = vmul.f32 %v645, %v575
  %v647 = vand.u32 2147483647, %v575
  %vm648 = vcmp.lt.f32.partialorder %v647, 0.0004427343
  %v649 = vsel %vm648, %v646, %v643
  %v650 = vadd.f32 %v577, 1.0
  %v651 = vlog2.pop %v650
  %v652 = vmul.f32 %v651, 0.6931472
  %v653 = vmul.f32 -0.5, %v577
  %v654 = vadd.f32 %v653, 1.0
  %v655 = vmul.f32 %v654, %v577
  %v656 = vand.u32 2147483647, %v577
  %vm657 = vcmp.lt.f32.partialorder %v656, 0.0004427343
  %v658 = vsel %vm657, %v655, %v652
  %v659 = vadd.f32 %v579, 1.0
  %v660 = vlog2.pop %v659
  %v661 = vmul.f32 %v660, 0.6931472
  %v662 = vmul.f32 -0.5, %v579
  %v663 = vadd.f32 %v662, 1.0
  %v664 = vmul.f32 %v663, %v579
  %v665 = vand.u32 2147483647, %v579
  %vm666 = vcmp.lt.f32.partialorder %v665, 0.0004427343
  %v667 = vsel %vm666, %v664, %v661
  %v668 = vadd.f32 %v581, 1.0
  %v669 = vlog2.pop %v668
  %v670 = vmul.f32 %v669, 0.6931472
  %v671 = vmul.f32 -0.5, %v581
  %v672 = vadd.f32 %v671, 1.0
  %v673 = vmul.f32 %v672, %v581
  %v674 = vand.u32 2147483647, %v581
  %vm675 = vcmp.lt.f32.partialorder %v674, 0.0004427343
  %v676 = vsel %vm675, %v673, %v670
  %v677 = vadd.f32 %v583, 1.0
  %v678 = vlog2.pop %v677
  %v679 = vmul.f32 %v678, 0.6931472
  %v680 = vmul.f32 -0.5, %v583
  %v681 = vadd.f32 %v680, 1.0
  %v682 = vmul.f32 %v681, %v583
  %v683 = vand.u32 2147483647, %v583
  %vm684 = vcmp.lt.f32.partialorder %v683, 0.0004427343
  %v685 = vsel %vm684, %v682, %v679
  %v686 = vadd.f32 %v585, 1.0
  %v687 = vlog2.pop %v686
  %v688 = vmul.f32 %v687, 0.6931472
  %v689 = vmul.f32 -0.5, %v585
  %v690 = vadd.f32 %v689, 1.0
  %v691 = vmul.f32 %v690, %v585
  %v692 = vand.u32 2147483647, %v585
  %vm693 = vcmp.lt.f32.partialorder %v692, 0.0004427343
  %v694 = vsel %vm693, %v691, %v688
  %v695 = vadd.f32 %v587, 1.0
  %v696 = vlog2.pop %v695
  %v697 = vmul.f32 %v696, 0.6931472
  %v698 = vmul.f32 -0.5, %v587
  %v699 = vadd.f32 %v698, 1.0
  %v700 = vmul.f32 %v699, %v587
  %v701 = vand.u32 2147483647, %v587
  %vm702 = vcmp.lt.f32.partialorder %v701, 0.0004427343
  %v703 = vsel %vm702, %v700, %v697
  %v704 = vadd.f32 %v589, 1.0
  %v705 = vlog2.pop %v704
  %v706 = vmul.f32 %v705, 0.6931472
  %v707 = vmul.f32 -0.5, %v589
  %v708 = vadd.f32 %v707, 1.0
  %v709 = vmul.f32 %v708, %v589
  %v710 = vand.u32 2147483647, %v589
  %vm711 = vcmp.lt.f32.partialorder %v710, 0.0004427343
  %v712 = vsel %vm711, %v709, %v706
  %v713 = vadd.f32 %v591, 1.0
  %v714 = vlog2.pop %v713
  %v715 = vmul.f32 %v714, 0.6931472
  %v716 = vmul.f32 -0.5, %v591
  %v717 = vadd.f32 %v716, 1.0
  %v718 = vmul.f32 %v717, %v591
  %v719 = vand.u32 2147483647, %v591
  %vm720 = vcmp.lt.f32.partialorder %v719, 0.0004427343
  %v721 = vsel %vm720, %v718, %v715
  %v722 = vadd.f32 %v593, 1.0
  %v723 = vlog2.pop %v722
  %v724 = vmul.f32 %v723, 0.6931472
  %v725 = vmul.f32 -0.5, %v593
  %v726 = vadd.f32 %v725, 1.0
  %v727 = vmul.f32 %v726, %v593
  %v728 = vand.u32 2147483647, %v593
  %vm729 = vcmp.lt.f32.partialorder %v728, 0.0004427343
  %v730 = vsel %vm729, %v727, %v724
  %v731 = vadd.f32 %v595, 1.0
  %v732 = vlog2.pop %v731
  %v733 = vmul.f32 %v732, 0.6931472
  %v734 = vmul.f32 -0.5, %v595
  %v735 = vadd.f32 %v734, 1.0
  %v736 = vmul.f32 %v735, %v595
  %v737 = vand.u32 2147483647, %v595
  %vm738 = vcmp.lt.f32.partialorder %v737, 0.0004427343
  %v739 = vsel %vm738, %v736, %v733
  %v740 = vadd.f32 %v516, %v604
  %v741 = vadd.f32 %v517, %v613
  %v742 = vadd.f32 %v518, %v622
  %v743 = vadd.f32 %v519, %v631
  %v744 = vadd.f32 %v520, %v640
  %v745 = vadd.f32 %v521, %v649
  %v746 = vadd.f32 %v522, %v658
  %v747 = vadd.f32 %v523, %v667
  %v748 = vadd.f32 %v524, %v676
  %v749 = vadd.f32 %v525, %v685
  %v750 = vadd.f32 %v526, %v694
  %v751 = vadd.f32 %v527, %v703
  %v752 = vadd.f32 %v528, %v712
  %v753 = vadd.f32 %v529, %v721
  %v754 = vadd.f32 %v530, %v730
  %v755 = vadd.f32 %v531, %v739
  %756 = vst [vmem:[%s6] sm:$0xff] %v740
  %757 = vst [vmem:[%s6 + $0x8] sm:$0xff] %v741
  %758 = vst [vmem:[%s6 + $0x10] sm:$0xff] %v742
  %759 = vst [vmem:[%s6 + $0x18] sm:$0xff] %v743
  %760 = vst [vmem:[%s6 + $0x20] sm:$0xff] %v744
  %761 = vst [vmem:[%s6 + $0x28] sm:$0xff] %v745
  %762 = vst [vmem:[%s6 + $0x30] sm:$0xff] %v746
  %763 = vst [vmem:[%s6 + $0x38] sm:$0xff] %v747
  %764 = vst [vmem:[%s6 + $0x40] sm:$0xff] %v748
  %765 = vst [vmem:[%s6 + $0x48] sm:$0xff] %v749
  %766 = vst [vmem:[%s6 + $0x50] sm:$0xff] %v750
  %767 = vst [vmem:[%s6 + $0x58] sm:$0xff] %v751
  %768 = vst [vmem:[%s6 + $0x60] sm:$0xff] %v752
  %769 = vst [vmem:[%s6 + $0x68] sm:$0xff] %v753
  %770 = vst [vmem:[%s6 + $0x70] sm:$0xff] %v754
  %771 = vst [vmem:[%s6 + $0x78] sm:$0xff] %v755
  // Predicated region
  $region22: #{rnn_model_forward.7} parent=0 // pred_check
    _
  $region23: #{rnn_model_forward.7} parent=0 // pred_check_branch
    %773 = sbr.rel (0) target = $region25
  $region24: #{rnn_model_forward.7} parent=0 // pred_region
    _
  $region25: #{rnn_model_forward.7} parent=0 // pred_fallthru
    _
  // Predicated region
  $region26: #{rnn_model_forward.7} parent=0 // pred_check
    _
  $region27: #{rnn_model_forward.7} parent=0 // pred_check_branch
    %775 = sbr.rel (0) target = $region29
  $region28: #{rnn_model_forward.7} parent=0 // pred_region
    _
  $region29: #{rnn_model_forward.7} parent=0 // pred_fallthru
    _
  // Predicated region
  $region30: #{rnn_model_forward.7} parent=0 // pred_check
    _
  $region31: #{rnn_model_forward.7} parent=0 // pred_check_branch
    %777 = sbr.rel (0) target = $region33
  $region32: #{rnn_model_forward.7} parent=0 // pred_region
    _
  $region33: #{rnn_model_forward.7} parent=0 // pred_fallthru
    _
  // Predicated region
  $region34: #{rnn_model_forward.7} parent=0 // pred_check
    _
  $region35: #{rnn_model_forward.7} parent=0 // pred_check_branch
    %779 = sbr.rel (0) target = $region37
  $region36: #{rnn_model_forward.7} parent=0 // pred_region
    _
  $region37: #{rnn_model_forward.7} parent=0 // pred_fallthru
    _

// kernel: rnn_model_forward.6
$region0: #{rnn_model_forward.6}
  #allocation0 [shape = 'u32[]', space=smem, size = 0x4, offset = 0x4, fixed_abs, tag = 'smem constant byte address 0x4 - core index']
  #allocation1 [shape = 'u32[144,128]{1,0:T(1,128)}', space=vmem, size = 0x12000, scoped, tag = 'internal scratch']
  #allocation2 [shape = 'f32[8,16,128]{2,1,0:T(8,128)}', space=vmem, size = 0x10000, scoped, tag = 'scratch operand']
  #allocation3 [shape = 'f32[16,128]{1,0:T(8,128)}', space=vmem, size = 0x2000, scoped, tag = 'scratch operand']
  %s0 = inlined_call_operand.vmem [shape: bf16[8,16,128], index: 0, kind: input, shape index: {}]
  %s1 = inlined_call_operand.vmem [shape: bf16[128,128], index: 1, kind: input, shape index: {}]
  %s2 = inlined_call_operand.hbm [shape: f32[128,128], index: 2, kind: input, shape index: {}]
  %s3 = inlined_call_operand.vmem [shape: f32[1,128], index: 3, kind: input, shape index: {}]
  %s4 = inlined_call_operand.vmem [shape: bf16[8,16,128], index: 4, kind: output, shape index: {}]
  %s5 = sld [smem:[#allocation0]]
  $region34: #{rnn_model_forward.6} parent=0
    _
  %s7 = ssub.s32 1, %s5
  %s8 = scalar_select 0, %s7, %s5
  $region1: #{rnn_model_forward.6} parent=0
    #allocation4 [shape = 'u8[65536]{0}', space=vmem, size = 0x10000, scoped, tag = 'input window, operand 2, single buffered']
    #allocation5 [shape = 's32[1]{0}', space=sflag, size = 0x4, scoped, tag = 'scoped memory for rnn_model_forward.6']
    %9 = vsyncpa [#allocation5], 0
    // Predicated region
    $region2: #{rnn_model_forward.6} parent=1 // pred_check
      _
    $region3: #{rnn_model_forward.6} parent=1 // pred_check_branch
      %11 = sbr.rel (0) target = $region5
    $region4: #{rnn_model_forward.6} parent=1 // pred_region
      _
    $region5: #{rnn_model_forward.6} parent=1 // pred_fallthru
      _
    // Predicated region
    $region6: #{rnn_model_forward.6} parent=1 // pred_check
      _
    $region7: #{rnn_model_forward.6} parent=1 // pred_check_branch
      %13 = sbr.rel (0) target = $region9
    $region8: #{rnn_model_forward.6} parent=1 // pred_region
      _
    $region9: #{rnn_model_forward.6} parent=1 // pred_fallthru
      _
    // Predicated region
    $region10: #{rnn_model_forward.6} parent=1 // pred_check
      _
    $region11: #{rnn_model_forward.6} parent=1 // pred_check_branch
      %15 = sbr.rel (0) target = $region13
    $region12: #{rnn_model_forward.6} parent=1 // pred_region
      %s17 = ssub.s32 2048, 2048
      %18 = vsyncadd [#allocation5], %s17
      %s19 = sshll.u32 [#allocation4], 4
      %s20 = int_to_ptr.vmem [resolvable:$true] %s19
      %25 = dma.hbm_to_vmem [thread:$0]  %s2, 2048, %s20, [#allocation5], 128, 128, 8
    $region13: #{rnn_model_forward.6} parent=1 // pred_fallthru
      _
    // Predicated region
    $region14: #{rnn_model_forward.6} parent=1 // pred_check
      _
    $region15: #{rnn_model_forward.6} parent=1 // pred_check_branch
      %27 = sbr.rel (0) target = $region17
    $region16: #{rnn_model_forward.6} parent=1 // pred_region
      _
    $region17: #{rnn_model_forward.6} parent=1 // pred_fallthru
      _
    // Predicated region
    $region18: #{rnn_model_forward.6} parent=1 // pred_check
      _
    $region19: #{rnn_model_forward.6} parent=1 // pred_check_branch
      %29 = sbr.rel (0) target = $region21
    $region20: #{rnn_model_forward.6} parent=1 // pred_region
      %30 = dma.done [#allocation5], 2048
    $region21: #{rnn_model_forward.6} parent=1 // pred_fallthru
      _
    %p32 = scmp.eq.s32.totalorder 0, 0
    // Predicated region
    $region22: #{rnn_model_forward.6} parent=1 // pred_check
      %p33 = pneg %p32
    $region23: #{rnn_model_forward.6} parent=1 // pred_check_branch
      %35 = sbr.rel (%p33) target = $region25
    $region24: #{rnn_model_forward.6} parent=1 // pred_region
      %36 = vst [vmem:[#allocation3] sm:$0xff] 0.0
      %37 = vst [vmem:[#allocation3 + $0x8] sm:$0xff] 0.0
    $region25: #{rnn_model_forward.6} parent=1 // pred_fallthru
      _
    %v38 = vld [vmem:[%s0] sm:$0xf]
    %v39 = vld [vmem:[%s0 + $0x4] sm:$0xf]
    %v40 = vld [vmem:[%s0 + $0x8] sm:$0xf]
    %v41 = vld [vmem:[%s0 + $0xc] sm:$0xf]
    %v42 = vld [vmem:[%s0 + $0x10] sm:$0xf]
    %v43 = vld [vmem:[%s0 + $0x14] sm:$0xf]
    %v44 = vld [vmem:[%s0 + $0x18] sm:$0xf]
    %v45 = vld [vmem:[%s0 + $0x1c] sm:$0xf]
    %v46 = vld [vmem:[%s0 + $0x20] sm:$0xf]
    %v47 = vld [vmem:[%s0 + $0x24] sm:$0xf]
    %v48 = vld [vmem:[%s0 + $0x28] sm:$0xf]
    %v49 = vld [vmem:[%s0 + $0x2c] sm:$0xf]
    %v50 = vld [vmem:[%s0 + $0x30] sm:$0xf]
    %v51 = vld [vmem:[%s0 + $0x34] sm:$0xf]
    %v52 = vld [vmem:[%s0 + $0x38] sm:$0xf]
    %v53 = vld [vmem:[%s0 + $0x3c] sm:$0xf]
    %v54 = vld [vmem:[%s1] sm:$0xf]
    %v55 = vld [vmem:[%s1 + $0x4] sm:$0xf]
    %v56 = vld [vmem:[%s1 + $0x8] sm:$0xf]
    %v57 = vld [vmem:[%s1 + $0xc] sm:$0xf]
    %v58 = vld [vmem:[%s1 + $0x10] sm:$0xf]
    %v59 = vld [vmem:[%s1 + $0x14] sm:$0xf]
    %v60 = vld [vmem:[%s1 + $0x18] sm:$0xf]
    %v61 = vld [vmem:[%s1 + $0x1c] sm:$0xf]
    %v62 = vld [vmem:[%s1 + $0x20] sm:$0xf]
    %v63 = vld [vmem:[%s1 + $0x24] sm:$0xf]
    %v64 = vld [vmem:[%s1 + $0x28] sm:$0xf]
    %v65 = vld [vmem:[%s1 + $0x2c] sm:$0xf]
    %v66 = vld [vmem:[%s1 + $0x30] sm:$0xf]
    %v67 = vld [vmem:[%s1 + $0x34] sm:$0xf]
    %v68 = vld [vmem:[%s1 + $0x38] sm:$0xf]
    %v69 = vld [vmem:[%s1 + $0x3c] sm:$0xf]
    %v70 = vld [vmem:[%s3] sm:$0x1]
    %v72 = vlaneseq
    %v73 = vshrl.u32 %v72, 7
    %v74 = vsub.s32 0, %v73
    %v75 = vrot.slane %v70, %v74
    %v93 = vunpack.c.l.b16 %v38
    %v94 = vunpack.c.l.b16 %v39
    %v95 = vunpack.c.l.b16 %v40
    %v96 = vunpack.c.l.b16 %v41
    %v97 = vunpack.c.l.b16 %v42
    %v98 = vunpack.c.l.b16 %v43
    %v99 = vunpack.c.l.b16 %v44
    %v100 = vunpack.c.l.b16 %v45
    %v101 = vunpack.c.l.b16 %v46
    %v102 = vunpack.c.l.b16 %v47
    %v103 = vunpack.c.l.b16 %v48
    %v104 = vunpack.c.l.b16 %v49
    %v105 = vunpack.c.l.b16 %v50
    %v106 = vunpack.c.l.b16 %v51
    %v107 = vunpack.c.l.b16 %v52
    %v108 = vunpack.c.l.b16 %v53
    %v109 = vpack.c.b16 %v94, %v93
    %v110 = vpack.c.b16 %v96, %v95
    %v111 = vpack.c.b16 %v98, %v97
    %v112 = vpack.c.b16 %v100, %v99
    %v113 = vpack.c.b16 %v102, %v101
    %v114 = vpack.c.b16 %v104, %v103
    %v115 = vpack.c.b16 %v106, %v105
    %v116 = vpack.c.b16 %v108, %v107
    %v141 = vunpack.c.l.b16 %v54
    %v142 = vunpack.c.l.b16 %v55
    %v143 = vunpack.c.l.b16 %v56
    %v144 = vunpack.c.l.b16 %v57
    %v145 = vunpack.c.l.b16 %v58
    %v146 = vunpack.c.l.b16 %v59
    %v147 = vunpack.c.l.b16 %v60
    %v148 = vunpack.c.l.b16 %v61
    %v149 = vunpack.c.l.b16 %v62
    %v150 = vunpack.c.l.b16 %v63
    %v151 = vunpack.c.l.b16 %v64
    %v152 = vunpack.c.l.b16 %v65
    %v153 = vunpack.c.l.b16 %v66
    %v154 = vunpack.c.l.b16 %v67
    %v155 = vunpack.c.l.b16 %v68
    %v156 = vunpack.c.l.b16 %v69
    %v157 = vpack.c.b16 %v142, %v141
    %v158 = vpack.c.b16 %v144, %v143
    %v159 = vpack.c.b16 %v146, %v145
    %v160 = vpack.c.b16 %v148, %v147
    %v161 = vpack.c.b16 %v150, %v149
    %v162 = vpack.c.b16 %v152, %v151
    %v163 = vpack.c.b16 %v154, %v153
    %v164 = vpack.c.b16 %v156, %v155
    %173 = vmatprep.subr.bf16.mxu0 0
    %174 = vmatpush1.bf16.msra.mxu0 %v164
    %175 = vmatprep.subr.bf16.mxu0 0
    %176 = vmatpush1.bf16.msra.mxu0 %v163
    %177 = vmatprep.subr.bf16.mxu0 0
    %178 = vmatpush1.bf16.msra.mxu0 %v162
    %179 = vmatprep.subr.bf16.mxu0 0
    %180 = vmatpush1.bf16.msra.mxu0 %v161
    %181 = vmatprep.subr.bf16.mxu0 0
    %182 = vmatpush1.bf16.msra.mxu0 %v160
    %183 = vmatprep.subr.bf16.mxu0 0
    %184 = vmatpush1.bf16.msra.mxu0 %v159
    %185 = vmatprep.subr.bf16.mxu0 0
    %186 = vmatpush1.bf16.msra.mxu0 %v158
    %187 = vmatprep.subr.bf16.mxu0 0
    %188 = vmatpush1.bf16.msra.mxu0 %v157
    %189 = vmatprep.subr.bf16.mxu0 0
    %190 = vmatpush2.bf16.msra.mxu0 0
    %191 = vmatprep.subr.bf16.mxu0 0
    %192 = vmatpush2.bf16.msra.mxu0 0
    %193 = vmatprep.subr.bf16.mxu0 0
    %194 = vmatpush2.bf16.msra.mxu0 0
    %195 = vmatprep.subr.bf16.mxu0 0
    %196 = vmatpush2.bf16.msra.mxu0 0
    %197 = vmatprep.subr.bf16.mxu0 0
    %198 = vmatpush2.bf16.msra.mxu0 0
    %199 = vmatprep.subr.bf16.mxu0 0
    %200 = vmatpush2.bf16.msra.mxu0 0
    %201 = vmatprep.subr.bf16.mxu0 0
    %202 = vmatpush2.bf16.msra.mxu0 0
    %203 = vmatprep.subr.bf16.mxu0 0
    %204 = vmatpush2.bf16.msra.mxu0 0
    %205 = vmatprep.mubr.bf16.mxu0 0
    %206 = vmatmul.mubr.bf16.gmra.mxu0 %v109
    %v207 = vpop.f32.mrf.mxu0
    %v208 = vadd.f32 %v75, %v207
    %v209 = vpop.f32.mrf.mxu0
    %v210 = vpop.f32.mrf.mxu0
    %v211 = vadd.f32 %v75, %v210
    %v212 = vpop.f32.mrf.mxu0
    %213 = vmatprep.mubr.bf16.mxu0 0
    %214 = vmatmul.mubr.bf16.gmra.mxu0 %v110
    %v215 = vpop.f32.mrf.mxu0
    %v216 = vadd.f32 %v75, %v215
    %v217 = vpop.f32.mrf.mxu0
    %v218 = vpop.f32.mrf.mxu0
    %v219 = vadd.f32 %v75, %v218
    %v220 = vpop.f32.mrf.mxu0
    %221 = vmatprep.mubr.bf16.mxu0 0
    %222 = vmatmul.mubr.bf16.gmra.mxu0 %v111
    %v223 = vpop.f32.mrf.mxu0
    %v224 = vadd.f32 %v75, %v223
    %v225 = vpop.f32.mrf.mxu0
    %v226 = vpop.f32.mrf.mxu0
    %v227 = vadd.f32 %v75, %v226
    %v228 = vpop.f32.mrf.mxu0
    %229 = vmatprep.mubr.bf16.mxu0 0
    %230 = vmatmul.mubr.bf16.gmra.mxu0 %v112
    %v231 = vpop.f32.mrf.mxu0
    %v232 = vadd.f32 %v75, %v231
    %v233 = vpop.f32.mrf.mxu0
    %v234 = vpop.f32.mrf.mxu0
    %v235 = vadd.f32 %v75, %v234
    %v236 = vpop.f32.mrf.mxu0
    %237 = vmatprep.mubr.bf16.mxu0 0
    %238 = vmatmul.mubr.bf16.gmra.mxu0 %v113
    %v239 = vpop.f32.mrf.mxu0
    %v240 = vadd.f32 %v75, %v239
    %v241 = vpop.f32.mrf.mxu0
    %v242 = vpop.f32.mrf.mxu0
    %v243 = vadd.f32 %v75, %v242
    %v244 = vpop.f32.mrf.mxu0
    %245 = vmatprep.mubr.bf16.mxu0 0
    %246 = vmatmul.mubr.bf16.gmra.mxu0 %v114
    %v247 = vpop.f32.mrf.mxu0
    %v248 = vadd.f32 %v75, %v247
    %v249 = vpop.f32.mrf.mxu0
    %v250 = vpop.f32.mrf.mxu0
    %v251 = vadd.f32 %v75, %v250
    %v252 = vpop.f32.mrf.mxu0
    %253 = vmatprep.mubr.bf16.mxu0 0
    %254 = vmatmul.mubr.bf16.gmra.mxu0 %v115
    %v255 = vpop.f32.mrf.mxu0
    %v256 = vadd.f32 %v75, %v255
    %v257 = vpop.f32.mrf.mxu0
    %v258 = vpop.f32.mrf.mxu0
    %v259 = vadd.f32 %v75, %v258
    %v260 = vpop.f32.mrf.mxu0
    %261 = vmatprep.mubr.bf16.mxu0 0
    %262 = vmatmul.mubr.bf16.gmra.mxu0 %v116
    %v263 = vpop.f32.mrf.mxu0
    %v264 = vadd.f32 %v75, %v263
    %v265 = vpop.f32.mrf.mxu0
    %v266 = vpop.f32.mrf.mxu0
    %v267 = vadd.f32 %v75, %v266
    %v268 = vpop.f32.mrf.mxu0
    %269 = vdwg.mxu0
    %270 = vst [vmem:[#allocation2] sm:$0xff] %v208
    %271 = vst [vmem:[#allocation2 + $0x8] sm:$0xff] %v211
    %272 = vst [vmem:[#allocation2 + $0x10] sm:$0xff] %v216
    %273 = vst [vmem:[#allocation2 + $0x18] sm:$0xff] %v219
    %274 = vst [vmem:[#allocation2 + $0x20] sm:$0xff] %v224
    %275 = vst [vmem:[#allocation2 + $0x28] sm:$0xff] %v227
    %276 = vst [vmem:[#allocation2 + $0x30] sm:$0xff] %v232
    %277 = vst [vmem:[#allocation2 + $0x38] sm:$0xff] %v235
    %278 = vst [vmem:[#allocation2 + $0x40] sm:$0xff] %v240
    %279 = vst [vmem:[#allocation2 + $0x48] sm:$0xff] %v243
    %280 = vst [vmem:[#allocation2 + $0x50] sm:$0xff] %v248
    %281 = vst [vmem:[#allocation2 + $0x58] sm:$0xff] %v251
    %282 = vst [vmem:[#allocation2 + $0x60] sm:$0xff] %v256
    %283 = vst [vmem:[#allocation2 + $0x68] sm:$0xff] %v259
    %284 = vst [vmem:[#allocation2 + $0x70] sm:$0xff] %v264
    %285 = vst [vmem:[#allocation2 + $0x78] sm:$0xff] %v267
    %v286 = vld [vmem:[#allocation4] sm:$0xff]
    %v287 = vld [vmem:[#allocation4 + $0x8] sm:$0xff]
    %v288 = vld [vmem:[#allocation4 + $0x10] sm:$0xff]
    %v289 = vld [vmem:[#allocation4 + $0x18] sm:$0xff]
    %v290 = vld [vmem:[#allocation4 + $0x20] sm:$0xff]
    %v291 = vld [vmem:[#allocation4 + $0x28] sm:$0xff]
    %v292 = vld [vmem:[#allocation4 + $0x30] sm:$0xff]
    %v293 = vld [vmem:[#allocation4 + $0x38] sm:$0xff]
    %v294 = vld [vmem:[#allocation4 + $0x40] sm:$0xff]
    %v295 = vld [vmem:[#allocation4 + $0x48] sm:$0xff]
    %v296 = vld [vmem:[#allocation4 + $0x50] sm:$0xff]
    %v297 = vld [vmem:[#allocation4 + $0x58] sm:$0xff]
    %v298 = vld [vmem:[#allocation4 + $0x60] sm:$0xff]
    %v299 = vld [vmem:[#allocation4 + $0x68] sm:$0xff]
    %v300 = vld [vmem:[#allocation4 + $0x70] sm:$0xff]
    %v301 = vld [vmem:[#allocation4 + $0x78] sm:$0xff]
    %v302 = vld [vmem:[#allocation3] sm:$0xff]
    %v303 = vld [vmem:[#allocation3 + $0x8] sm:$0xff]
    %v304 = vld [vmem:[#allocation2] sm:$0xff]
    %v305 = vld [vmem:[#allocation2 + $0x8] sm:$0xff]
    %306 = vmatprep.subr.mxu0 0.0
    %307 = vmatpush1.msra.mxu0 %v301
    %308 = vmatprep.subr.mxu0 0.0
    %309 = vmatpush1.msra.mxu0 %v300
    %310 = vmatprep.subr.mxu0 0.0
    %311 = vmatpush1.msra.mxu0 %v299
    %312 = vmatprep.subr.mxu0 0.0
    %313 = vmatpush1.msra.mxu0 %v298
    %314 = vmatprep.subr.mxu0 0.0
    %315 = vmatpush1.msra.mxu0 %v297
    %316 = vmatprep.subr.mxu0 0.0
    %317 = vmatpush1.msra.mxu0 %v296
    %318 = vmatprep.subr.mxu0 0.0
    %319 = vmatpush1.msra.mxu0 %v295
    %320 = vmatprep.subr.mxu0 0.0
    %321 = vmatpush1.msra.mxu0 %v294
    %322 = vmatprep.subr.mxu0 0.0
    %323 = vmatpush1.msra.mxu0 %v293
    %324 = vmatprep.subr.mxu0 0.0
    %325 = vmatpush1.msra.mxu0 %v292
    %326 = vmatprep.subr.mxu0 0.0
    %327 = vmatpush1.msra.mxu0 %v291
    %328 = vmatprep.subr.mxu0 0.0
    %329 = vmatpush1.msra.mxu0 %v290
    %330 = vmatprep.subr.mxu0 0.0
    %331 = vmatpush1.msra.mxu0 %v289
    %332 = vmatprep.subr.mxu0 0.0
    %333 = vmatpush1.msra.mxu0 %v288
    %334 = vmatprep.subr.mxu0 0.0
    %335 = vmatpush1.msra.mxu0 %v287
    %336 = vmatprep.subr.mxu0 0.0
    %337 = vmatpush1.msra.mxu0 %v286
    %338 = vmatprep.subr.mxu0 0.0
    %339 = vmatpush2.msra.mxu0 0.0
    %340 = vmatprep.subr.mxu0 0.0
    %341 = vmatpush2.msra.mxu0 0.0
    %342 = vmatprep.subr.mxu0 0.0
    %343 = vmatpush2.msra.mxu0 0.0
    %344 = vmatprep.subr.mxu0 0.0
    %345 = vmatpush2.msra.mxu0 0.0
    %346 = vmatprep.subr.mxu0 0.0
    %347 = vmatpush2.msra.mxu0 0.0
    %348 = vmatprep.subr.mxu0 0.0
    %349 = vmatpush2.msra.mxu0 0.0
    %350 = vmatprep.subr.mxu0 0.0
    %351 = vmatpush2.msra.mxu0 0.0
    %352 = vmatprep.subr.mxu0 0.0
    %353 = vmatpush2.msra.mxu0 0.0
    %354 = vmatprep.subr.mxu0 0.0
    %355 = vmatpush2.msra.mxu0 0.0
    %356 = vmatprep.subr.mxu0 0.0
    %357 = vmatpush2.msra.mxu0 0.0
    %358 = vmatprep.subr.mxu0 0.0
    %359 = vmatpush2.msra.mxu0 0.0
    %360 = vmatprep.subr.mxu0 0.0
    %361 = vmatpush2.msra.mxu0 0.0
    %362 = vmatprep.subr.mxu0 0.0
    %363 = vmatpush2.msra.mxu0 0.0
    %364 = vmatprep.subr.mxu0 0.0
    %365 = vmatpush2.msra.mxu0 0.0
    %366 = vmatprep.subr.mxu0 0.0
    %367 = vmatpush2.msra.mxu0 0.0
    %368 = vmatprep.subr.mxu0 0.0
    %369 = vmatpush2.msra.mxu0 0.0
    %370 = vmatprep.mubr.f32.mxu0 0.0
    %371 = vmatmul.mubr.f32.gmra.mxu0 %v302
    %v372 = vpop.f32.mrf.mxu0
    %v373 = vadd.f32 0.0, %v372
    %v374 = vpop.f32.mrf.mxu0
    %375 = vmatprep.mubr.f32.mxu0 0.0
    %376 = vmatmul.mubr.f32.gmra.mxu0 %v303
    %v377 = vpop.f32.mrf.mxu0
    %v378 = vadd.f32 0.0, %v377
    %v379 = vpop.f32.mrf.mxu0
    %380 = vdwg.mxu0
    %v381 = vadd.f32 %v304, %v373
    %v382 = vadd.f32 %v305, %v378
    %v383 = vtanh.pop %v381
    %v384 = vtanh.pop %v382
    %v385 = vpack.c.bf16 %v384, %v383
    %v387 = vunpack.c.l.b16 %v385
    %v388 = vunpack.c.h.b16 %v385
    %v389 = vpack.c.b16 %v387, %v387
    %v390 = vpack.c.b16 %v388, %v388
    %393 = vst [vmem:[%s4] sm:$0xf] %v389
    %394 = vst [vmem:[%s4 + $0x4] sm:$0xf] %v390
    %s395 = scalar_lea.vmem [#allocation2], 16
    %v396 = vld [vmem:[%s395] sm:$0xff]
    %v397 = vld [vmem:[%s395 + $0x8] sm:$0xff]
    %398 = vmatprep.subr.mxu0 0.0
    %399 = vmatpush1.msra.mxu0 %v301
    %400 = vmatprep.subr.mxu0 0.0
    %401 = vmatpush1.msra.mxu0 %v300
    %402 = vmatprep.subr.mxu0 0.0
    %403 = vmatpush1.msra.mxu0 %v299
    %404 = vmatprep.subr.mxu0 0.0
    %405 = vmatpush1.msra.mxu0 %v298
    %406 = vmatprep.subr.mxu0 0.0
    %407 = vmatpush1.msra.mxu0 %v297
    %408 = vmatprep.subr.mxu0 0.0
    %409 = vmatpush1.msra.mxu0 %v296
    %410 = vmatprep.subr.mxu0 0.0
    %411 = vmatpush1.msra.mxu0 %v295
    %412 = vmatprep.subr.mxu0 0.0
    %413 = vmatpush1.msra.mxu0 %v294
    %414 = vmatprep.subr.mxu0 0.0
    %415 = vmatpush1.msra.mxu0 %v293
    %416 = vmatprep.subr.mxu0 0.0
    %417 = vmatpush1.msra.mxu0 %v292
    %418 = vmatprep.subr.mxu0 0.0
    %419 = vmatpush1.msra.mxu0 %v291
    %420 = vmatprep.subr.mxu0 0.0
    %421 = vmatpush1.msra.mxu0 %v290
    %422 = vmatprep.subr.mxu0 0.0
    %423 = vmatpush1.msra.mxu0 %v289
    %424 = vmatprep.subr.mxu0 0.0
    %425 = vmatpush1.msra.mxu0 %v288
    %426 = vmatprep.subr.mxu0 0.0
    %427 = vmatpush1.msra.mxu0 %v287
    %428 = vmatprep.subr.mxu0 0.0
    %429 = vmatpush1.msra.mxu0 %v286
    %430 = vmatprep.subr.mxu0 0.0
    %431 = vmatpush2.msra.mxu0 0.0
    %432 = vmatprep.subr.mxu0 0.0
    %433 = vmatpush2.msra.mxu0 0.0
    %434 = vmatprep.subr.mxu0 0.0
    %435 = vmatpush2.msra.mxu0 0.0
    %436 = vmatprep.subr.mxu0 0.0
    %437 = vmatpush2.msra.mxu0 0.0
    %438 = vmatprep.subr.mxu0 0.0
    %439 = vmatpush2.msra.mxu0 0.0
    %440 = vmatprep.subr.mxu0 0.0
    %441 = vmatpush2.msra.mxu0 0.0
    %442 = vmatprep.subr.mxu0 0.0
    %443 = vmatpush2.msra.mxu0 0.0
    %444 = vmatprep.subr.mxu0 0.0
    %445 = vmatpush2.msra.mxu0 0.0
    %446 = vmatprep.subr.mxu0 0.0
    %447 = vmatpush2.msra.mxu0 0.0
    %448 = vmatprep.subr.mxu0 0.0
    %449 = vmatpush2.msra.mxu0 0.0
    %450 = vmatprep.subr.mxu0 0.0
    %451 = vmatpush2.msra.mxu0 0.0
    %452 = vmatprep.subr.mxu0 0.0
    %453 = vmatpush2.msra.mxu0 0.0
    %454 = vmatprep.subr.mxu0 0.0
    %455 = vmatpush2.msra.mxu0 0.0
    %456 = vmatprep.subr.mxu0 0.0
    %457 = vmatpush2.msra.mxu0 0.0
    %458 = vmatprep.subr.mxu0 0.0
    %459 = vmatpush2.msra.mxu0 0.0
    %460 = vmatprep.subr.mxu0 0.0
    %461 = vmatpush2.msra.mxu0 0.0
    %462 = vmatprep.mubr.f32.mxu0 0.0
    %463 = vmatmul.mubr.f32.gmra.mxu0 %v383
    %v464 = vpop.f32.mrf.mxu0
    %v465 = vadd.f32 0.0, %v464
    %v466 = vpop.f32.mrf.mxu0
    %467 = vmatprep.mubr.f32.mxu0 0.0
    %468 = vmatmul.mubr.f32.gmra.mxu0 %v384
    %v469 = vpop.f32.mrf.mxu0
    %v470 = vadd.f32 0.0, %v469
    %v471 = vpop.f32.mrf.mxu0
    %472 = vdwg.mxu0
    %v473 = vadd.f32 %v396, %v465
    %v474 = vadd.f32 %v397, %v470
    %v475 = vtanh.pop %v473
    %v476 = vtanh.pop %v474
    %v477 = vpack.c.bf16 %v476, %v475
    %v479 = vunpack.c.l.b16 %v477
    %v480 = vunpack.c.h.b16 %v477
    %v481 = vpack.c.b16 %v479, %v479
    %v482 = vpack.c.b16 %v480, %v480
    %s485 = scalar_lea.vmem %s4, 8
    %486 = vst [vmem:[%s485] sm:$0xf] %v481
    %487 = vst [vmem:[%s485 + $0x4] sm:$0xf] %v482
    %s488 = scalar_lea.vmem [#allocation2], 32
    %v489 = vld [vmem:[%s488] sm:$0xff]
    %v490 = vld [vmem:[%s488 + $0x8] sm:$0xff]
    %491 = vmatprep.subr.mxu0 0.0
    %492 = vmatpush1.msra.mxu0 %v301
    %493 = vmatprep.subr.mxu0 0.0
    %494 = vmatpush1.msra.mxu0 %v300
    %495 = vmatprep.subr.mxu0 0.0
    %496 = vmatpush1.msra.mxu0 %v299
    %497 = vmatprep.subr.mxu0 0.0
    %498 = vmatpush1.msra.mxu0 %v298
    %499 = vmatprep.subr.mxu0 0.0
    %500 = vmatpush1.msra.mxu0 %v297
    %501 = vmatprep.subr.mxu0 0.0
    %502 = vmatpush1.msra.mxu0 %v296
    %503 = vmatprep.subr.mxu0 0.0
    %504 = vmatpush1.msra.mxu0 %v295
    %505 = vmatprep.subr.mxu0 0.0
    %506 = vmatpush1.msra.mxu0 %v294
    %507 = vmatprep.subr.mxu0 0.0
    %508 = vmatpush1.msra.mxu0 %v293
    %509 = vmatprep.subr.mxu0 0.0
    %510 = vmatpush1.msra.mxu0 %v292
    %511 = vmatprep.subr.mxu0 0.0
    %512 = vmatpush1.msra.mxu0 %v291
    %513 = vmatprep.subr.mxu0 0.0
    %514 = vmatpush1.msra.mxu0 %v290
    %515 = vmatprep.subr.mxu0 0.0
    %516 = vmatpush1.msra.mxu0 %v289
    %517 = vmatprep.subr.mxu0 0.0
    %518 = vmatpush1.msra.mxu0 %v288
    %519 = vmatprep.subr.mxu0 0.0
    %520 = vmatpush1.msra.mxu0 %v287
    %521 = vmatprep.subr.mxu0 0.0
    %522 = vmatpush1.msra.mxu0 %v286
    %523 = vmatprep.subr.mxu0 0.0
    %524 = vmatpush2.msra.mxu0 0.0
    %525 = vmatprep.subr.mxu0 0.0
    %526 = vmatpush2.msra.mxu0 0.0
    %527 = vmatprep.subr.mxu0 0.0
    %528 = vmatpush2.msra.mxu0 0.0
    %529 = vmatprep.subr.mxu0 0.0
    %530 = vmatpush2.msra.mxu0 0.0
    %531 = vmatprep.subr.mxu0 0.0
    %532 = vmatpush2.msra.mxu0 0.0
    %533 = vmatprep.subr.mxu0 0.0
    %534 = vmatpush2.msra.mxu0 0.0
    %535 = vmatprep.subr.mxu0 0.0
    %536 = vmatpush2.msra.mxu0 0.0
    %537 = vmatprep.subr.mxu0 0.0
    %538 = vmatpush2.msra.mxu0 0.0
    %539 = vmatprep.subr.mxu0 0.0
    %540 = vmatpush2.msra.mxu0 0.0
    %541 = vmatprep.subr.mxu0 0.0
    %542 = vmatpush2.msra.mxu0 0.0
    %543 = vmatprep.subr.mxu0 0.0
    %544 = vmatpush2.msra.mxu0 0.0
    %545 = vmatprep.subr.mxu0 0.0
    %546 = vmatpush2.msra.mxu0 0.0
    %547 = vmatprep.subr.mxu0 0.0
    %548 = vmatpush2.msra.mxu0 0.0
    %549 = vmatprep.subr.mxu0 0.0
    %550 = vmatpush2.msra.mxu0 0.0
    %551 = vmatprep.subr.mxu0 0.0
    %552 = vmatpush2.msra.mxu0 0.0
    %553 = vmatprep.subr.mxu0 0.0
    %554 = vmatpush2.msra.mxu0 0.0
    %555 = vmatprep.mubr.f32.mxu0 0.0
    %556 = vmatmul.mubr.f32.gmra.mxu0 %v475
    %v557 = vpop.f32.mrf.mxu0
    %v558 = vadd.f32 0.0, %v557
    %v559 = vpop.f32.mrf.mxu0
    %560 = vmatprep.mubr.f32.mxu0 0.0
    %561 = vmatmul.mubr.f32.gmra.mxu0 %v476
    %v562 = vpop.f32.mrf.mxu0
    %v563 = vadd.f32 0.0, %v562
    %v564 = vpop.f32.mrf.mxu0
    %565 = vdwg.mxu0
    %v566 = vadd.f32 %v489, %v558
    %v567 = vadd.f32 %v490, %v563
    %v568 = vtanh.pop %v566
    %v569 = vtanh.pop %v567
    %v570 = vpack.c.bf16 %v569, %v568
    %v572 = vunpack.c.l.b16 %v570
    %v573 = vunpack.c.h.b16 %v570
    %v574 = vpack.c.b16 %v572, %v572
    %v575 = vpack.c.b16 %v573, %v573
    %s578 = scalar_lea.vmem %s4, 16
    %579 = vst [vmem:[%s578] sm:$0xf] %v574
    %580 = vst [vmem:[%s578 + $0x4] sm:$0xf] %v575
    %s581 = scalar_lea.vmem [#allocation2], 48
    %v582 = vld [vmem:[%s581] sm:$0xff]
    %v583 = vld [vmem:[%s581 + $0x8] sm:$0xff]
    %584 = vmatprep.subr.mxu0 0.0
    %585 = vmatpush1.msra.mxu0 %v301
    %586 = vmatprep.subr.mxu0 0.0
    %587 = vmatpush1.msra.mxu0 %v300
    %588 = vmatprep.subr.mxu0 0.0
    %589 = vmatpush1.msra.mxu0 %v299
    %590 = vmatprep.subr.mxu0 0.0
    %591 = vmatpush1.msra.mxu0 %v298
    %592 = vmatprep.subr.mxu0 0.0
    %593 = vmatpush1.msra.mxu0 %v297
    %594 = vmatprep.subr.mxu0 0.0
    %595 = vmatpush1.msra.mxu0 %v296
    %596 = vmatprep.subr.mxu0 0.0
    %597 = vmatpush1.msra.mxu0 %v295
    %598 = vmatprep.subr.mxu0 0.0
    %599 = vmatpush1.msra.mxu0 %v294
    %600 = vmatprep.subr.mxu0 0.0
    %601 = vmatpush1.msra.mxu0 %v293
    %602 = vmatprep.subr.mxu0 0.0
    %603 = vmatpush1.msra.mxu0 %v292
    %604 = vmatprep.subr.mxu0 0.0
    %605 = vmatpush1.msra.mxu0 %v291
    %606 = vmatprep.subr.mxu0 0.0
    %607 = vmatpush1.msra.mxu0 %v290
    %608 = vmatprep.subr.mxu0 0.0
    %609 = vmatpush1.msra.mxu0 %v289
    %610 = vmatprep.subr.mxu0 0.0
    %611 = vmatpush1.msra.mxu0 %v288
    %612 = vmatprep.subr.mxu0 0.0
    %613 = vmatpush1.msra.mxu0 %v287
    %614 = vmatprep.subr.mxu0 0.0
    %615 = vmatpush1.msra.mxu0 %v286
    %616 = vmatprep.subr.mxu0 0.0
    %617 = vmatpush2.msra.mxu0 0.0
    %618 = vmatprep.subr.mxu0 0.0
    %619 = vmatpush2.msra.mxu0 0.0
    %620 = vmatprep.subr.mxu0 0.0
    %621 = vmatpush2.msra.mxu0 0.0
    %622 = vmatprep.subr.mxu0 0.0
    %623 = vmatpush2.msra.mxu0 0.0
    %624 = vmatprep.subr.mxu0 0.0
    %625 = vmatpush2.msra.mxu0 0.0
    %626 = vmatprep.subr.mxu0 0.0
    %627 = vmatpush2.msra.mxu0 0.0
    %628 = vmatprep.subr.mxu0 0.0
    %629 = vmatpush2.msra.mxu0 0.0
    %630 = vmatprep.subr.mxu0 0.0
    %631 = vmatpush2.msra.mxu0 0.0
    %632 = vmatprep.subr.mxu0 0.0
    %633 = vmatpush2.msra.mxu0 0.0
    %634 = vmatprep.subr.mxu0 0.0
    %635 = vmatpush2.msra.mxu0 0.0
    %636 = vmatprep.subr.mxu0 0.0
    %637 = vmatpush2.msra.mxu0 0.0
    %638 = vmatprep.subr.mxu0 0.0
    %639 = vmatpush2.msra.mxu0 0.0
    %640 = vmatprep.subr.mxu0 0.0
    %641 = vmatpush2.msra.mxu0 0.0
    %642 = vmatprep.subr.mxu0 0.0
    %643 = vmatpush2.msra.mxu0 0.0
    %644 = vmatprep.subr.mxu0 0.0
    %645 = vmatpush2.msra.mxu0 0.0
    %646 = vmatprep.subr.mxu0 0.0
    %647 = vmatpush2.msra.mxu0 0.0
    %648 = vmatprep.mubr.f32.mxu0 0.0
    %649 = vmatmul.mubr.f32.gmra.mxu0 %v568
    %v650 = vpop.f32.mrf.mxu0
    %v651 = vadd.f32 0.0, %v650
    %v652 = vpop.f32.mrf.mxu0
    %653 = vmatprep.mubr.f32.mxu0 0.0
    %654 = vmatmul.mubr.f32.gmra.mxu0 %v569
    %v655 = vpop.f32.mrf.mxu0
    %v656 = vadd.f32 0.0, %v655
    %v657 = vpop.f32.mrf.mxu0
    %658 = vdwg.mxu0
    %v659 = vadd.f32 %v582, %v651
    %v660 = vadd.f32 %v583, %v656
    %v661 = vtanh.pop %v659
    %v662 = vtanh.pop %v660
    %v663 = vpack.c.bf16 %v662, %v661
    %v665 = vunpack.c.l.b16 %v663
    %v666 = vunpack.c.h.b16 %v663
    %v667 = vpack.c.b16 %v665, %v665
    %v668 = vpack.c.b16 %v666, %v666
    %s671 = scalar_lea.vmem %s4, 24
    %672 = vst [vmem:[%s671] sm:$0xf] %v667
    %673 = vst [vmem:[%s671 + $0x4] sm:$0xf] %v668
    %s674 = scalar_lea.vmem [#allocation2], 64
    %v675 = vld [vmem:[%s674] sm:$0xff]
    %v676 = vld [vmem:[%s674 + $0x8] sm:$0xff]
    %677 = vmatprep.subr.mxu0 0.0
    %678 = vmatpush1.msra.mxu0 %v301
    %679 = vmatprep.subr.mxu0 0.0
    %680 = vmatpush1.msra.mxu0 %v300
    %681 = vmatprep.subr.mxu0 0.0
    %682 = vmatpush1.msra.mxu0 %v299
    %683 = vmatprep.subr.mxu0 0.0
    %684 = vmatpush1.msra.mxu0 %v298
    %685 = vmatprep.subr.mxu0 0.0
    %686 = vmatpush1.msra.mxu0 %v297
    %687 = vmatprep.subr.mxu0 0.0
    %688 = vmatpush1.msra.mxu0 %v296
    %689 = vmatprep.subr.mxu0 0.0
    %690 = vmatpush1.msra.mxu0 %v295
    %691 = vmatprep.subr.mxu0 0.0
    %692 = vmatpush1.msra.mxu0 %v294
    %693 = vmatprep.subr.mxu0 0.0
    %694 = vmatpush1.msra.mxu0 %v293
    %695 = vmatprep.subr.mxu0 0.0
    %696 = vmatpush1.msra.mxu0 %v292
    %697 = vmatprep.subr.mxu0 0.0
    %698 = vmatpush1.msra.mxu0 %v291
    %699 = vmatprep.subr.mxu0 0.0
    %700 = vmatpush1.msra.mxu0 %v290
    %701 = vmatprep.subr.mxu0 0.0
    %702 = vmatpush1.msra.mxu0 %v289
    %703 = vmatprep.subr.mxu0 0.0
    %704 = vmatpush1.msra.mxu0 %v288
    %705 = vmatprep.subr.mxu0 0.0
    %706 = vmatpush1.msra.mxu0 %v287
    %707 = vmatprep.subr.mxu0 0.0
    %708 = vmatpush1.msra.mxu0 %v286
    %709 = vmatprep.subr.mxu0 0.0
    %710 = vmatpush2.msra.mxu0 0.0
    %711 = vmatprep.subr.mxu0 0.0
    %712 = vmatpush2.msra.mxu0 0.0
    %713 = vmatprep.subr.mxu0 0.0
    %714 = vmatpush2.msra.mxu0 0.0
    %715 = vmatprep.subr.mxu0 0.0
    %716 = vmatpush2.msra.mxu0 0.0
    %717 = vmatprep.subr.mxu0 0.0
    %718 = vmatpush2.msra.mxu0 0.0
    %719 = vmatprep.subr.mxu0 0.0
    %720 = vmatpush2.msra.mxu0 0.0
    %721 = vmatprep.subr.mxu0 0.0
    %722 = vmatpush2.msra.mxu0 0.0
    %723 = vmatprep.subr.mxu0 0.0
    %724 = vmatpush2.msra.mxu0 0.0
    %725 = vmatprep.subr.mxu0 0.0
    %726 = vmatpush2.msra.mxu0 0.0
    %727 = vmatprep.subr.mxu0 0.0
    %728 = vmatpush2.msra.mxu0 0.0
    %729 = vmatprep.subr.mxu0 0.0
    %730 = vmatpush2.msra.mxu0 0.0
    %731 = vmatprep.subr.mxu0 0.0
    %732 = vmatpush2.msra.mxu0 0.0
    %733 = vmatprep.subr.mxu0 0.0
    %734 = vmatpush2.msra.mxu0 0.0
    %735 = vmatprep.subr.mxu0 0.0
    %736 = vmatpush2.msra.mxu0 0.0
    %737 = vmatprep.subr.mxu0 0.0
    %738 = vmatpush2.msra.mxu0 0.0
    %739 = vmatprep.subr.mxu0 0.0
    %740 = vmatpush2.msra.mxu0 0.0
    %741 = vmatprep.mubr.f32.mxu0 0.0
    %742 = vmatmul.mubr.f32.gmra.mxu0 %v661
    %v743 = vpop.f32.mrf.mxu0
    %v744 = vadd.f32 0.0, %v743
    %v745 = vpop.f32.mrf.mxu0
    %746 = vmatprep.mubr.f32.mxu0 0.0
    %747 = vmatmul.mubr.f32.gmra.mxu0 %v662
    %v748 = vpop.f32.mrf.mxu0
    %v749 = vadd.f32 0.0, %v748
    %v750 = vpop.f32.mrf.mxu0
    %751 = vdwg.mxu0
    %v752 = vadd.f32 %v675, %v744
    %v753 = vadd.f32 %v676, %v749
    %v754 = vtanh.pop %v752
    %v755 = vtanh.pop %v753
    %v756 = vpack.c.bf16 %v755, %v754
    %v758 = vunpack.c.l.b16 %v756
    %v759 = vunpack.c.h.b16 %v756
    %v760 = vpack.c.b16 %v758, %v758
    %v761 = vpack.c.b16 %v759, %v759
    %s764 = scalar_lea.vmem %s4, 32
    %765 = vst [vmem:[%s764] sm:$0xf] %v760
    %766 = vst [vmem:[%s764 + $0x4] sm:$0xf] %v761
    %s767 = scalar_lea.vmem [#allocation2], 80
    %v768 = vld [vmem:[%s767] sm:$0xff]
    %v769 = vld [vmem:[%s767 + $0x8] sm:$0xff]
    %770 = vmatprep.subr.mxu0 0.0
    %771 = vmatpush1.msra.mxu0 %v301
    %772 = vmatprep.subr.mxu0 0.0
    %773 = vmatpush1.msra.mxu0 %v300
    %774 = vmatprep.subr.mxu0 0.0
    %775 = vmatpush1.msra.mxu0 %v299
    %776 = vmatprep.subr.mxu0 0.0
    %777 = vmatpush1.msra.mxu0 %v298
    %778 = vmatprep.subr.mxu0 0.0
    %779 = vmatpush1.msra.mxu0 %v297
    %780 = vmatprep.subr.mxu0 0.0
    %781 = vmatpush1.msra.mxu0 %v296
    %782 = vmatprep.subr.mxu0 0.0
    %783 = vmatpush1.msra.mxu0 %v295
    %784 = vmatprep.subr.mxu0 0.0
    %785 = vmatpush1.msra.mxu0 %v294
    %786 = vmatprep.subr.mxu0 0.0
    %787 = vmatpush1.msra.mxu0 %v293
    %788 = vmatprep.subr.mxu0 0.0
    %789 = vmatpush1.msra.mxu0 %v292
    %790 = vmatprep.subr.mxu0 0.0
    %791 = vmatpush1.msra.mxu0 %v291
    %792 = vmatprep.subr.mxu0 0.0
    %793 = vmatpush1.msra.mxu0 %v290
    %794 = vmatprep.subr.mxu0 0.0
    %795 = vmatpush1.msra.mxu0 %v289
    %796 = vmatprep.subr.mxu0 0.0
    %797 = vmatpush1.msra.mxu0 %v288
    %798 = vmatprep.subr.mxu0 0.0
    %799 = vmatpush1.msra.mxu0 %v287
    %800 = vmatprep.subr.mxu0 0.0
    %801 = vmatpush1.msra.mxu0 %v286
    %802 = vmatprep.subr.mxu0 0.0
    %803 = vmatpush2.msra.mxu0 0.0
    %804 = vmatprep.subr.mxu0 0.0
    %805 = vmatpush2.msra.mxu0 0.0
    %806 = vmatprep.subr.mxu0 0.0
    %807 = vmatpush2.msra.mxu0 0.0
    %808 = vmatprep.subr.mxu0 0.0
    %809 = vmatpush2.msra.mxu0 0.0
    %810 = vmatprep.subr.mxu0 0.0
    %811 = vmatpush2.msra.mxu0 0.0
    %812 = vmatprep.subr.mxu0 0.0
    %813 = vmatpush2.msra.mxu0 0.0
    %814 = vmatprep.subr.mxu0 0.0
    %815 = vmatpush2.msra.mxu0 0.0
    %816 = vmatprep.subr.mxu0 0.0
    %817 = vmatpush2.msra.mxu0 0.0
    %818 = vmatprep.subr.mxu0 0.0
    %819 = vmatpush2.msra.mxu0 0.0
    %820 = vmatprep.subr.mxu0 0.0
    %821 = vmatpush2.msra.mxu0 0.0
    %822 = vmatprep.subr.mxu0 0.0
    %823 = vmatpush2.msra.mxu0 0.0
    %824 = vmatprep.subr.mxu0 0.0
    %825 = vmatpush2.msra.mxu0 0.0
    %826 = vmatprep.subr.mxu0 0.0
    %827 = vmatpush2.msra.mxu0 0.0
    %828 = vmatprep.subr.mxu0 0.0
    %829 = vmatpush2.msra.mxu0 0.0
    %830 = vmatprep.subr.mxu0 0.0
    %831 = vmatpush2.msra.mxu0 0.0
    %832 = vmatprep.subr.mxu0 0.0
    %833 = vmatpush2.msra.mxu0 0.0
    %834 = vmatprep.mubr.f32.mxu0 0.0
    %835 = vmatmul.mubr.f32.gmra.mxu0 %v754
    %v836 = vpop.f32.mrf.mxu0
    %v837 = vadd.f32 0.0, %v836
    %v838 = vpop.f32.mrf.mxu0
    %839 = vmatprep.mubr.f32.mxu0 0.0
    %840 = vmatmul.mubr.f32.gmra.mxu0 %v755
    %v841 = vpop.f32.mrf.mxu0
    %v842 = vadd.f32 0.0, %v841
    %v843 = vpop.f32.mrf.mxu0
    %844 = vdwg.mxu0
    %v845 = vadd.f32 %v768, %v837
    %v846 = vadd.f32 %v769, %v842
    %v847 = vtanh.pop %v845
    %v848 = vtanh.pop %v846
    %v849 = vpack.c.bf16 %v848, %v847
    %v851 = vunpack.c.l.b16 %v849
    %v852 = vunpack.c.h.b16 %v849
    %v853 = vpack.c.b16 %v851, %v851
    %v854 = vpack.c.b16 %v852, %v852
    %s857 = scalar_lea.vmem %s4, 40
    %858 = vst [vmem:[%s857] sm:$0xf] %v853
    %859 = vst [vmem:[%s857 + $0x4] sm:$0xf] %v854
    %s860 = scalar_lea.vmem [#allocation2], 96
    %v861 = vld [vmem:[%s860] sm:$0xff]
    %v862 = vld [vmem:[%s860 + $0x8] sm:$0xff]
    %863 = vmatprep.subr.mxu0 0.0
    %864 = vmatpush1.msra.mxu0 %v301
    %865 = vmatprep.subr.mxu0 0.0
    %866 = vmatpush1.msra.mxu0 %v300
    %867 = vmatprep.subr.mxu0 0.0
    %868 = vmatpush1.msra.mxu0 %v299
    %869 = vmatprep.subr.mxu0 0.0
    %870 = vmatpush1.msra.mxu0 %v298
    %871 = vmatprep.subr.mxu0 0.0
    %872 = vmatpush1.msra.mxu0 %v297
    %873 = vmatprep.subr.mxu0 0.0
    %874 = vmatpush1.msra.mxu0 %v296
    %875 = vmatprep.subr.mxu0 0.0
    %876 = vmatpush1.msra.mxu0 %v295
    %877 = vmatprep.subr.mxu0 0.0
    %878 = vmatpush1.msra.mxu0 %v294
    %879 = vmatprep.subr.mxu0 0.0
    %880 = vmatpush1.msra.mxu0 %v293
    %881 = vmatprep.subr.mxu0 0.0
    %882 = vmatpush1.msra.mxu0 %v292
    %883 = vmatprep.subr.mxu0 0.0
    %884 = vmatpush1.msra.mxu0 %v291
    %885 = vmatprep.subr.mxu0 0.0
    %886 = vmatpush1.msra.mxu0 %v290
    %887 = vmatprep.subr.mxu0 0.0
    %888 = vmatpush1.msra.mxu0 %v289
    %889 = vmatprep.subr.mxu0 0.0
    %890 = vmatpush1.msra.mxu0 %v288
    %891 = vmatprep.subr.mxu0 0.0
    %892 = vmatpush1.msra.mxu0 %v287
    %893 = vmatprep.subr.mxu0 0.0
    %894 = vmatpush1.msra.mxu0 %v286
    %895 = vmatprep.subr.mxu0 0.0
    %896 = vmatpush2.msra.mxu0 0.0
    %897 = vmatprep.subr.mxu0 0.0
    %898 = vmatpush2.msra.mxu0 0.0
    %899 = vmatprep.subr.mxu0 0.0
    %900 = vmatpush2.msra.mxu0 0.0
    %901 = vmatprep.subr.mxu0 0.0
    %902 = vmatpush2.msra.mxu0 0.0
    %903 = vmatprep.subr.mxu0 0.0
    %904 = vmatpush2.msra.mxu0 0.0
    %905 = vmatprep.subr.mxu0 0.0
    %906 = vmatpush2.msra.mxu0 0.0
    %907 = vmatprep.subr.mxu0 0.0
    %908 = vmatpush2.msra.mxu0 0.0
    %909 = vmatprep.subr.mxu0 0.0
    %910 = vmatpush2.msra.mxu0 0.0
    %911 = vmatprep.subr.mxu0 0.0
    %912 = vmatpush2.msra.mxu0 0.0
    %913 = vmatprep.subr.mxu0 0.0
    %914 = vmatpush2.msra.mxu0 0.0
    %915 = vmatprep.subr.mxu0 0.0
    %916 = vmatpush2.msra.mxu0 0.0
    %917 = vmatprep.subr.mxu0 0.0
    %918 = vmatpush2.msra.mxu0 0.0
    %919 = vmatprep.subr.mxu0 0.0
    %920 = vmatpush2.msra.mxu0 0.0
    %921 = vmatprep.subr.mxu0 0.0
    %922 = vmatpush2.msra.mxu0 0.0
    %923 = vmatprep.subr.mxu0 0.0
    %924 = vmatpush2.msra.mxu0 0.0
    %925 = vmatprep.subr.mxu0 0.0
    %926 = vmatpush2.msra.mxu0 0.0
    %927 = vmatprep.mubr.f32.mxu0 0.0
    %928 = vmatmul.mubr.f32.gmra.mxu0 %v847
    %v929 = vpop.f32.mrf.mxu0
    %v930 = vadd.f32 0.0, %v929
    %v931 = vpop.f32.mrf.mxu0
    %932 = vmatprep.mubr.f32.mxu0 0.0
    %933 = vmatmul.mubr.f32.gmra.mxu0 %v848
    %v934 = vpop.f32.mrf.mxu0
    %v935 = vadd.f32 0.0, %v934
    %v936 = vpop.f32.mrf.mxu0
    %937 = vdwg.mxu0
    %v938 = vadd.f32 %v861, %v930
    %v939 = vadd.f32 %v862, %v935
    %v940 = vtanh.pop %v938
    %v941 = vtanh.pop %v939
    %v942 = vpack.c.bf16 %v941, %v940
    %v944 = vunpack.c.l.b16 %v942
    %v945 = vunpack.c.h.b16 %v942
    %v946 = vpack.c.b16 %v944, %v944
    %v947 = vpack.c.b16 %v945, %v945
    %s950 = scalar_lea.vmem %s4, 48
    %951 = vst [vmem:[%s950] sm:$0xf] %v946
    %952 = vst [vmem:[%s950 + $0x4] sm:$0xf] %v947
    %s953 = scalar_lea.vmem [#allocation2], 112
    %v954 = vld [vmem:[%s953] sm:$0xff]
    %v955 = vld [vmem:[%s953 + $0x8] sm:$0xff]
    %956 = vmatprep.subr.mxu0 0.0
    %957 = vmatpush1.msra.mxu0 %v301
    %958 = vmatprep.subr.mxu0 0.0
    %959 = vmatpush1.msra.mxu0 %v300
    %960 = vmatprep.subr.mxu0 0.0
    %961 = vmatpush1.msra.mxu0 %v299
    %962 = vmatprep.subr.mxu0 0.0
    %963 = vmatpush1.msra.mxu0 %v298
    %964 = vmatprep.subr.mxu0 0.0
    %965 = vmatpush1.msra.mxu0 %v297
    %966 = vmatprep.subr.mxu0 0.0
    %967 = vmatpush1.msra.mxu0 %v296
    %968 = vmatprep.subr.mxu0 0.0
    %969 = vmatpush1.msra.mxu0 %v295
    %970 = vmatprep.subr.mxu0 0.0
    %971 = vmatpush1.msra.mxu0 %v294
    %972 = vmatprep.subr.mxu0 0.0
    %973 = vmatpush1.msra.mxu0 %v293
    %974 = vmatprep.subr.mxu0 0.0
    %975 = vmatpush1.msra.mxu0 %v292
    %976 = vmatprep.subr.mxu0 0.0
    %977 = vmatpush1.msra.mxu0 %v291
    %978 = vmatprep.subr.mxu0 0.0
    %979 = vmatpush1.msra.mxu0 %v290
    %980 = vmatprep.subr.mxu0 0.0
    %981 = vmatpush1.msra.mxu0 %v289
    %982 = vmatprep.subr.mxu0 0.0
    %983 = vmatpush1.msra.mxu0 %v288
    %984 = vmatprep.subr.mxu0 0.0
    %985 = vmatpush1.msra.mxu0 %v287
    %986 = vmatprep.subr.mxu0 0.0
    %987 = vmatpush1.msra.mxu0 %v286
    %988 = vmatprep.subr.mxu0 0.0
    %989 = vmatpush2.msra.mxu0 0.0
    %990 = vmatprep.subr.mxu0 0.0
    %991 = vmatpush2.msra.mxu0 0.0
    %992 = vmatprep.subr.mxu0 0.0
    %993 = vmatpush2.msra.mxu0 0.0
    %994 = vmatprep.subr.mxu0 0.0
    %995 = vmatpush2.msra.mxu0 0.0
    %996 = vmatprep.subr.mxu0 0.0
    %997 = vmatpush2.msra.mxu0 0.0
    %998 = vmatprep.subr.mxu0 0.0
    %999 = vmatpush2.msra.mxu0 0.0
    %1000 = vmatprep.subr.mxu0 0.0
    %1001 = vmatpush2.msra.mxu0 0.0
    %1002 = vmatprep.subr.mxu0 0.0
    %1003 = vmatpush2.msra.mxu0 0.0
    %1004 = vmatprep.subr.mxu0 0.0
    %1005 = vmatpush2.msra.mxu0 0.0
    %1006 = vmatprep.subr.mxu0 0.0
    %1007 = vmatpush2.msra.mxu0 0.0
    %1008 = vmatprep.subr.mxu0 0.0
    %1009 = vmatpush2.msra.mxu0 0.0
    %1010 = vmatprep.subr.mxu0 0.0
    %1011 = vmatpush2.msra.mxu0 0.0
    %1012 = vmatprep.subr.mxu0 0.0
    %1013 = vmatpush2.msra.mxu0 0.0
    %1014 = vmatprep.subr.mxu0 0.0
    %1015 = vmatpush2.msra.mxu0 0.0
    %1016 = vmatprep.subr.mxu0 0.0
    %1017 = vmatpush2.msra.mxu0 0.0
    %1018 = vmatprep.subr.mxu0 0.0
    %1019 = vmatpush2.msra.mxu0 0.0
    %1020 = vmatprep.mubr.f32.mxu0 0.0
    %1021 = vmatmul.mubr.f32.gmra.mxu0 %v940
    %v1022 = vpop.f32.mrf.mxu0
    %v1023 = vadd.f32 0.0, %v1022
    %v1024 = vpop.f32.mrf.mxu0
    %1025 = vmatprep.mubr.f32.mxu0 0.0
    %1026 = vmatmul.mubr.f32.gmra.mxu0 %v941
    %v1027 = vpop.f32.mrf.mxu0
    %v1028 = vadd.f32 0.0, %v1027
    %v1029 = vpop.f32.mrf.mxu0
    %1030 = vdwg.mxu0
    %v1031 = vadd.f32 %v954, %v1023
    %v1032 = vadd.f32 %v955, %v1028
    %v1033 = vtanh.pop %v1031
    %v1034 = vtanh.pop %v1032
    %v1035 = vpack.c.bf16 %v1034, %v1033
    %v1037 = vunpack.c.l.b16 %v1035
    %v1038 = vunpack.c.h.b16 %v1035
    %v1039 = vpack.c.b16 %v1037, %v1037
    %v1040 = vpack.c.b16 %v1038, %v1038
    %s1043 = scalar_lea.vmem %s4, 56
    %1044 = vst [vmem:[%s1043] sm:$0xf] %v1039
    %1045 = vst [vmem:[%s1043 + $0x4] sm:$0xf] %v1040
    %1046 = vst [vmem:[#allocation3] sm:$0xff] %v1033
    %1047 = vst [vmem:[#allocation3 + $0x8] sm:$0xff] %v1034
    // Predicated region
    $region26: #{rnn_model_forward.6} parent=1 // pred_check
      _
    $region27: #{rnn_model_forward.6} parent=1 // pred_check_branch
      %1049 = sbr.rel (0) target = $region29
    $region28: #{rnn_model_forward.6} parent=1 // pred_region
      _
    $region29: #{rnn_model_forward.6} parent=1 // pred_fallthru
      _
    // Predicated region
    $region30: #{rnn_model_forward.6} parent=1 // pred_check
      _
    $region31: #{rnn_model_forward.6} parent=1 // pred_check_branch
      %1051 = sbr.rel (0) target = $region33
    $region32: #{rnn_model_forward.6} parent=1 // pred_region
      _
    $region33: #{rnn_model_forward.6} parent=1 // pred_fallthru
      _
    %1052 = vsyncpa [#allocation5], 1

// kernel: rnn_model_forward.5
$region0: #{rnn_model_forward.5}
  #allocation0 [shape = 'u32[]', space=smem, size = 0x4, offset = 0x4, fixed_abs, tag = 'smem constant byte address 0x4 - core index']
  #allocation1 [shape = 'u32[144,128]{1,0:T(1,128)}', space=vmem, size = 0x12000, scoped, tag = 'internal scratch']
  %s0 = inlined_call_operand.vmem [shape: f32[16,128], index: 0, kind: input, shape index: {}]
  %s1 = inlined_call_operand.vmem [shape: bf16[128,128], index: 1, kind: input, shape index: {}]
  %s2 = inlined_call_operand.vmem [shape: f32[1,128], index: 2, kind: input, shape index: {}]
  %s3 = inlined_call_operand.vmem [shape: bf16[128,256], index: 3, kind: input, shape index: {}]
  %s4 = inlined_call_operand.vmem [shape: f32[1,256], index: 4, kind: input, shape index: {}]
  %s5 = inlined_call_operand.vmem [shape: f32[16,128], index: 5, kind: output, shape index: {0}]
  %s6 = inlined_call_operand.vmem [shape: f32[16,128], index: 6, kind: output, shape index: {1}]
  %7 = xla_tuple %s5, %s6
  %s8 = sld [smem:[#allocation0]]
  $region38: #{rnn_model_forward.5} parent=0
    _
  %s10 = ssub.s32 1, %s8
  %s11 = scalar_select 0, %s10, %s8
  // Predicated region
  $region2: #{rnn_model_forward.5} parent=0 // pred_check
    _
  $region3: #{rnn_model_forward.5} parent=0 // pred_check_branch
    %13 = sbr.rel (0) target = $region5
  $region4: #{rnn_model_forward.5} parent=0 // pred_region
    _
  $region5: #{rnn_model_forward.5} parent=0 // pred_fallthru
    _
  // Predicated region
  $region6: #{rnn_model_forward.5} parent=0 // pred_check
    _
  $region7: #{rnn_model_forward.5} parent=0 // pred_check_branch
    %15 = sbr.rel (0) target = $region9
  $region8: #{rnn_model_forward.5} parent=0 // pred_region
    _
  $region9: #{rnn_model_forward.5} parent=0 // pred_fallthru
    _
  // Predicated region
  $region10: #{rnn_model_forward.5} parent=0 // pred_check
    _
  $region11: #{rnn_model_forward.5} parent=0 // pred_check_branch
    %17 = sbr.rel (0) target = $region13
  $region12: #{rnn_model_forward.5} parent=0 // pred_region
    _
  $region13: #{rnn_model_forward.5} parent=0 // pred_fallthru
    _
  // Predicated region
  $region14: #{rnn_model_forward.5} parent=0 // pred_check
    _
  $region15: #{rnn_model_forward.5} parent=0 // pred_check_branch
    %19 = sbr.rel (0) target = $region17
  $region16: #{rnn_model_forward.5} parent=0 // pred_region
    _
  $region17: #{rnn_model_forward.5} parent=0 // pred_fallthru
    _
  // Predicated region
  $region18: #{rnn_model_forward.5} parent=0 // pred_check
    _
  $region19: #{rnn_model_forward.5} parent=0 // pred_check_branch
    %21 = sbr.rel (0) target = $region21
  $region20: #{rnn_model_forward.5} parent=0 // pred_region
    _
  $region21: #{rnn_model_forward.5} parent=0 // pred_fallthru
    _
  %v23 = vld [vmem:[%s0] sm:$0xff]
  %v24 = vld [vmem:[%s0 + $0x8] sm:$0xff]
  %v25 = vpack.c.bf16 %v24, %v23
  %v26 = vld [vmem:[%s1] sm:$0xf]
  %v27 = vld [vmem:[%s1 + $0x4] sm:$0xf]
  %v28 = vld [vmem:[%s1 + $0x8] sm:$0xf]
  %v29 = vld [vmem:[%s1 + $0xc] sm:$0xf]
  %v30 = vld [vmem:[%s1 + $0x10] sm:$0xf]
  %v31 = vld [vmem:[%s1 + $0x14] sm:$0xf]
  %v32 = vld [vmem:[%s1 + $0x18] sm:$0xf]
  %v33 = vld [vmem:[%s1 + $0x1c] sm:$0xf]
  %v34 = vld [vmem:[%s1 + $0x20] sm:$0xf]
  %v35 = vld [vmem:[%s1 + $0x24] sm:$0xf]
  %v36 = vld [vmem:[%s1 + $0x28] sm:$0xf]
  %v37 = vld [vmem:[%s1 + $0x2c] sm:$0xf]
  %v38 = vld [vmem:[%s1 + $0x30] sm:$0xf]
  %v39 = vld [vmem:[%s1 + $0x34] sm:$0xf]
  %v40 = vld [vmem:[%s1 + $0x38] sm:$0xf]
  %v41 = vld [vmem:[%s1 + $0x3c] sm:$0xf]
  %v42 = vld [vmem:[%s2] sm:$0x1]
  %v44 = vlaneseq
  %v45 = vshrl.u32 %v44, 7
  %v46 = vsub.s32 0, %v45
  %v47 = vrot.slane %v42, %v46
  %v65 = vunpack.c.l.b16 %v26
  %v66 = vunpack.c.l.b16 %v27
  %v67 = vunpack.c.l.b16 %v28
  %v68 = vunpack.c.l.b16 %v29
  %v69 = vunpack.c.l.b16 %v30
  %v70 = vunpack.c.l.b16 %v31
  %v71 = vunpack.c.l.b16 %v32
  %v72 = vunpack.c.l.b16 %v33
  %v73 = vunpack.c.l.b16 %v34
  %v74 = vunpack.c.l.b16 %v35
  %v75 = vunpack.c.l.b16 %v36
  %v76 = vunpack.c.l.b16 %v37
  %v77 = vunpack.c.l.b16 %v38
  %v78 = vunpack.c.l.b16 %v39
  %v79 = vunpack.c.l.b16 %v40
  %v80 = vunpack.c.l.b16 %v41
  %v81 = vpack.c.b16 %v66, %v65
  %v82 = vpack.c.b16 %v68, %v67
  %v83 = vpack.c.b16 %v70, %v69
  %v84 = vpack.c.b16 %v72, %v71
  %v85 = vpack.c.b16 %v74, %v73
  %v86 = vpack.c.b16 %v76, %v75
  %v87 = vpack.c.b16 %v78, %v77
  %v88 = vpack.c.b16 %v80, %v79
  %97 = vmatprep.subr.bf16.mxu0 0
  %98 = vmatpush1.bf16.msra.mxu0 %v88
  %99 = vmatprep.subr.bf16.mxu0 0
  %100 = vmatpush1.bf16.msra.mxu0 %v87
  %101 = vmatprep.subr.bf16.mxu0 0
  %102 = vmatpush1.bf16.msra.mxu0 %v86
  %103 = vmatprep.subr.bf16.mxu0 0
  %104 = vmatpush1.bf16.msra.mxu0 %v85
  %105 = vmatprep.subr.bf16.mxu0 0
  %106 = vmatpush1.bf16.msra.mxu0 %v84
  %107 = vmatprep.subr.bf16.mxu0 0
  %108 = vmatpush1.bf16.msra.mxu0 %v83
  %109 = vmatprep.subr.bf16.mxu0 0
  %110 = vmatpush1.bf16.msra.mxu0 %v82
  %111 = vmatprep.subr.bf16.mxu0 0
  %112 = vmatpush1.bf16.msra.mxu0 %v81
  %113 = vmatprep.subr.bf16.mxu0 0
  %114 = vmatpush2.bf16.msra.mxu0 0
  %115 = vmatprep.subr.bf16.mxu0 0
  %116 = vmatpush2.bf16.msra.mxu0 0
  %117 = vmatprep.subr.bf16.mxu0 0
  %118 = vmatpush2.bf16.msra.mxu0 0
  %119 = vmatprep.subr.bf16.mxu0 0
  %120 = vmatpush2.bf16.msra.mxu0 0
  %121 = vmatprep.subr.bf16.mxu0 0
  %122 = vmatpush2.bf16.msra.mxu0 0
  %123 = vmatprep.subr.bf16.mxu0 0
  %124 = vmatpush2.bf16.msra.mxu0 0
  %125 = vmatprep.subr.bf16.mxu0 0
  %126 = vmatpush2.bf16.msra.mxu0 0
  %127 = vmatprep.subr.bf16.mxu0 0
  %128 = vmatpush2.bf16.msra.mxu0 0
  %129 = vmatprep.mubr.bf16.mxu0 0
  %130 = vmatmul.mubr.bf16.gmra.mxu0 %v25
  %v131 = vpop.f32.mrf.mxu0
  %v132 = vadd.f32 %v47, %v131
  %v133 = vpop.f32.mrf.mxu0
  %v134 = vpop.f32.mrf.mxu0
  %v135 = vadd.f32 %v47, %v134
  %v136 = vpop.f32.mrf.mxu0
  %137 = vdwg.mxu0
  %v138 = vmax.f32 %v132, 0.0
  %v139 = vmax.f32 %v135, 0.0
  %v140 = vpack.c.bf16 %v139, %v138
  %v141 = vld [vmem:[%s3] sm:$0xff]
  %v142 = vld [vmem:[%s3 + $0x8] sm:$0xff]
  %v143 = vld [vmem:[%s3 + $0x10] sm:$0xff]
  %v144 = vld [vmem:[%s3 + $0x18] sm:$0xff]
  %v145 = vld [vmem:[%s3 + $0x20] sm:$0xff]
  %v146 = vld [vmem:[%s3 + $0x28] sm:$0xff]
  %v147 = vld [vmem:[%s3 + $0x30] sm:$0xff]
  %v148 = vld [vmem:[%s3 + $0x38] sm:$0xff]
  %v149 = vld [vmem:[%s3 + $0x40] sm:$0xff]
  %v150 = vld [vmem:[%s3 + $0x48] sm:$0xff]
  %v151 = vld [vmem:[%s3 + $0x50] sm:$0xff]
  %v152 = vld [vmem:[%s3 + $0x58] sm:$0xff]
  %v153 = vld [vmem:[%s3 + $0x60] sm:$0xff]
  %v154 = vld [vmem:[%s3 + $0x68] sm:$0xff]
  %v155 = vld [vmem:[%s3 + $0x70] sm:$0xff]
  %v156 = vld [vmem:[%s3 + $0x78] sm:$0xff]
  %v157 = vld [vmem:[%s4] sm:$0x3]
  %v159 = vlaneseq
  %v160 = vshrl.u32 %v159, 7
  %v161 = vsub.s32 0, %v160
  %v162 = vrot.slane %v157, %v161
  %v163 = vlaneseq
  %v164 = vshrl.u32 %v163, 7
  %v165 = vsub.s32 1, %v164
  %v166 = vrot.slane %v157, %v165
  %v185 = vunpack.c.l.b16 %v141
  %v186 = vunpack.c.h.b16 %v141
  %v187 = vunpack.c.l.b16 %v142
  %v188 = vunpack.c.h.b16 %v142
  %v189 = vunpack.c.l.b16 %v143
  %v190 = vunpack.c.h.b16 %v143
  %v191 = vunpack.c.l.b16 %v144
  %v192 = vunpack.c.h.b16 %v144
  %v193 = vunpack.c.l.b16 %v145
  %v194 = vunpack.c.h.b16 %v145
  %v195 = vunpack.c.l.b16 %v146
  %v196 = vunpack.c.h.b16 %v146
  %v197 = vunpack.c.l.b16 %v147
  %v198 = vunpack.c.h.b16 %v147
  %v199 = vunpack.c.l.b16 %v148
  %v200 = vunpack.c.h.b16 %v148
  %v201 = vunpack.c.l.b16 %v149
  %v202 = vunpack.c.h.b16 %v149
  %v203 = vunpack.c.l.b16 %v150
  %v204 = vunpack.c.h.b16 %v150
  %v205 = vunpack.c.l.b16 %v151
  %v206 = vunpack.c.h.b16 %v151
  %v207 = vunpack.c.l.b16 %v152
  %v208 = vunpack.c.h.b16 %v152
  %v209 = vunpack.c.l.b16 %v153
  %v210 = vunpack.c.h.b16 %v153
  %v211 = vunpack.c.l.b16 %v154
  %v212 = vunpack.c.h.b16 %v154
  %v213 = vunpack.c.l.b16 %v155
  %v214 = vunpack.c.h.b16 %v155
  %v215 = vunpack.c.l.b16 %v156
  %v216 = vunpack.c.h.b16 %v156
  %v217 = vpack.c.b16 %v187, %v185
  %v218 = vpack.c.b16 %v188, %v186
  %v219 = vpack.c.b16 %v191, %v189
  %v220 = vpack.c.b16 %v192, %v190
  %v221 = vpack.c.b16 %v195, %v193
  %v222 = vpack.c.b16 %v196, %v194
  %v223 = vpack.c.b16 %v199, %v197
  %v224 = vpack.c.b16 %v200, %v198
  %v225 = vpack.c.b16 %v203, %v201
  %v226 = vpack.c.b16 %v204, %v202
  %v227 = vpack.c.b16 %v207, %v205
  %v228 = vpack.c.b16 %v208, %v206
  %v229 = vpack.c.b16 %v211, %v209
  %v230 = vpack.c.b16 %v212, %v210
  %v231 = vpack.c.b16 %v215, %v213
  %v232 = vpack.c.b16 %v216, %v214
  %249 = vmatprep.subr.bf16.mxu0 %v232
  %250 = vmatpush1.bf16.msra.mxu0 %v231
  %251 = vmatprep.subr.bf16.mxu0 %v230
  %252 = vmatpush1.bf16.msra.mxu0 %v229
  %253 = vmatprep.subr.bf16.mxu0 %v228
  %254 = vmatpush1.bf16.msra.mxu0 %v227
  %255 = vmatprep.subr.bf16.mxu0 %v226
  %256 = vmatpush1.bf16.msra.mxu0 %v225
  %257 = vmatprep.subr.bf16.mxu0 %v224
  %258 = vmatpush1.bf16.msra.mxu0 %v223
  %259 = vmatprep.subr.bf16.mxu0 %v222
  %260 = vmatpush1.bf16.msra.mxu0 %v221
  %261 = vmatprep.subr.bf16.mxu0 %v220
  %262 = vmatpush1.bf16.msra.mxu0 %v219
  %263 = vmatprep.subr.bf16.mxu0 %v218
  %264 = vmatpush1.bf16.msra.mxu0 %v217
  %265 = vmatprep.subr.bf16.mxu0 0
  %266 = vmatpush2.bf16.msra.mxu0 0
  %267 = vmatprep.subr.bf16.mxu0 0
  %268 = vmatpush2.bf16.msra.mxu0 0
  %269 = vmatprep.subr.bf16.mxu0 0
  %270 = vmatpush2.bf16.msra.mxu0 0
  %271 = vmatprep.subr.bf16.mxu0 0
  %272 = vmatpush2.bf16.msra.mxu0 0
  %273 = vmatprep.subr.bf16.mxu0 0
  %274 = vmatpush2.bf16.msra.mxu0 0
  %275 = vmatprep.subr.bf16.mxu0 0
  %276 = vmatpush2.bf16.msra.mxu0 0
  %277 = vmatprep.subr.bf16.mxu0 0
  %278 = vmatpush2.bf16.msra.mxu0 0
  %279 = vmatprep.subr.bf16.mxu0 0
  %280 = vmatpush2.bf16.msra.mxu0 0
  %281 = vmatprep.mubr.bf16.mxu0 0
  %282 = vmatmul.mubr.bf16.gmra.mxu0 %v140
  %v283 = vpop.f32.mrf.mxu0
  %v284 = vadd.f32 %v162, %v283
  %v285 = vpop.f32.mrf.mxu0
  %v286 = vadd.f32 %v166, %v285
  %v287 = vpop.f32.mrf.mxu0
  %v288 = vadd.f32 %v162, %v287
  %v289 = vpop.f32.mrf.mxu0
  %v290 = vadd.f32 %v166, %v289
  %291 = vdwg.mxu0
  %292 = vst [vmem:[%s5] sm:$0xff] %v284
  %293 = vst [vmem:[%s5 + $0x8] sm:$0xff] %v288
  %v294 = vmax.f32 %v286, 0.0
  %v295 = vmax.f32 %v290, 0.0
  %v296 = vand.u32 2147483647, %v286
  %v297 = vand.u32 2147483647, %v290
  %v298 = vsub.f32 0.0, %v296
  %v299 = vsub.f32 0.0, %v297
  %v300 = vmul.f32 %v298, 1.442695
  %v301 = vpow.pop %v300
  %v302 = vmul.f32 %v299, 1.442695
  %v303 = vpow.pop %v302
  %v304 = vadd.f32 %v301, 1.0
  %v305 = vlog2.pop %v304
  %v306 = vmul.f32 %v305, 0.6931472
  %v307 = vmul.f32 -0.5, %v301
  %v308 = vadd.f32 %v307, 1.0
  %v309 = vmul.f32 %v308, %v301
  %v310 = vand.u32 2147483647, %v301
  %vm311 = vcmp.lt.f32.partialorder %v310, 0.0004427343
  %v312 = vsel %vm311, %v309, %v306
  %v313 = vadd.f32 %v303, 1.0
  %v314 = vlog2.pop %v313
  %v315 = vmul.f32 %v314, 0.6931472
  %v316 = vmul.f32 -0.5, %v303
  %v317 = vadd.f32 %v316, 1.0
  %v318 = vmul.f32 %v317, %v303
  %v319 = vand.u32 2147483647, %v303
  %vm320 = vcmp.lt.f32.partialorder %v319, 0.0004427343
  %v321 = vsel %vm320, %v318, %v315
  %v322 = vadd.f32 %v294, %v312
  %v323 = vadd.f32 %v295, %v321
  %324 = vst [vmem:[%s6] sm:$0xff] %v322
  %325 = vst [vmem:[%s6 + $0x8] sm:$0xff] %v323
  // Predicated region
  $region22: #{rnn_model_forward.5} parent=0 // pred_check
    _
  $region23: #{rnn_model_forward.5} parent=0 // pred_check_branch
    %327 = sbr.rel (0) target = $region25
  $region24: #{rnn_model_forward.5} parent=0 // pred_region
    _
  $region25: #{rnn_model_forward.5} parent=0 // pred_fallthru
    _
  // Predicated region
  $region26: #{rnn_model_forward.5} parent=0 // pred_check
    _
  $region27: #{rnn_model_forward.5} parent=0 // pred_check_branch
    %329 = sbr.rel (0) target = $region29
  $region28: #{rnn_model_forward.5} parent=0 // pred_region
    _
  $region29: #{rnn_model_forward.5} parent=0 // pred_fallthru
    _
  // Predicated region
  $region30: #{rnn_model_forward.5} parent=0 // pred_check
    _
  $region31: #{rnn_model_forward.5} parent=0 // pred_check_branch
    %331 = sbr.rel (0) target = $region33
  $region32: #{rnn_model_forward.5} parent=0 // pred_region
    _
  $region33: #{rnn_model_forward.5} parent=0 // pred_fallthru
    _
  // Predicated region
  $region34: #{rnn_model_forward.5} parent=0 // pred_check
    _
  $region35: #{rnn_model_forward.5} parent=0 // pred_check_branch
    %333 = sbr.rel (0) target = $region37
  $region36: #{rnn_model_forward.5} parent=0 // pred_region
    _
  $region37: #{rnn_model_forward.5} parent=0 // pred_fallthru
    _

</llo_original>
